<compile_context>
chip_gen: v7x
topology: tpu7x:2x2x1
jax: 0.10.0
libtpu: 0.0.40
codegen_flags: <defaults>
</compile_context>

<pallas_src>
from functools import partial

import jax
import jax.numpy as jnp
from jax.experimental import pallas as pl
from jax.experimental.pallas import tpu as pltpu


LANE = 128  # TPU vreg lane width


def _round_up(n, m):
    return ((n + m - 1) // m) * m


# ------------------------------- fused kernel ------------------------------- #

def _make_fused_mlp_kernel(real_dims, n_layers):
    """Kernel closure over the *real* (unpadded) layer widths.

    Ref layout: (x_ref, w0, b0, w1, b1, ..., w_{L-1}, b_{L-1}, o_ref), all in VMEM.
    Weights/biases are zero-padded to multiples of 128 lanes; x is raw (N, 1) when
    d_in == 1, otherwise lane-padded (N, pad(d_in)).
    """

    def kernel(*refs):
        x_ref = refs[0]
        o_ref = refs[-1]
        param_refs = refs[1:-1]

        h = x_ref[...]                                   # (N, 1) or (N, pad(d_in))
        for l in range(n_layers):
            w = param_refs[2 * l][...]                   # (pad(fin), pad(fout))
            b = param_refs[2 * l + 1][...]               # (1, pad(fout))
            if l == 0 and real_dims[0] == 1:
                # K == 1 contraction: VPU broadcast multiply-add, skip the MXU.
                # (N, 1) * (1, pad(fout)) + (1, pad(fout)) -> (N, pad(fout))
                y = h[:, 0:1] * w[0:1, :] + b
            else:
                y = jnp.dot(h, w,
                            preferred_element_type=jnp.float32,
                            precision=jax.lax.Precision.HIGHEST) + b
            if l < n_layers - 1:
                # CELU(alpha=1): x if x > 0 else exp(x) - 1   (exp runs on the EUP)
                # Padded lanes stay exactly 0 through this (CELU(0) == 0).
                y = jnp.where(y > 0.0, y, jnp.exp(y) - 1.0)
            h = y
        o_ref[...] = h                                   # full-width lane-dense store

    return kernel


# ------------------------ one-time parameter preparation --------------------- #

def prepare_params(params, d_in):
    """One-time padding of weights/biases to lane-dense shapes.

    params = [(W, b), ...] with W of shape (fin, fout) (so the kernel computes x @ W + b).
    Returns (flat_padded_params, dims) where flat is (w0p, b0p, w1p, b1p, ...).
    Call this ONCE at init; the hot forward path takes the pre-padded arrays.
    """
    dims = [d_in] + [w.shape[1] for (w, _) in params]
    dims_pad = [_round_up(d, LANE) for d in dims]
    flat = []
    for l, (w, b) in enumerate(params):
        wp = jnp.zeros((dims_pad[l], dims_pad[l + 1]), jnp.float32)
        wp = wp.at[: dims[l], : dims[l + 1]].set(w.astype(jnp.float32))
        bp = jnp.zeros((1, dims_pad[l + 1]), jnp.float32)
        bp = bp.at[:, : dims[l + 1]].set(b.astype(jnp.float32))
        flat += [wp, bp]
    return tuple(jax.device_put(p) for p in flat), tuple(dims)


# --------------------------------- hot path ---------------------------------- #

@partial(jax.jit, static_argnames=("dims",))
def mlp_forward_padded(x, padded_params, dims):
    """Fused forward.  Returns the lane-padded output (N, pad(d_out)); the consumer
    slices out the first dims[-1] columns (kept out of the hot path per review)."""
    n = x.shape[0]
    L = len(padded_params) // 2
    dims_pad = [_round_up(d, LANE) for d in dims]

    if dims[0] == 1:
        # No lane padding of x: the layer-0 VPU branch reads the raw (N, 1) column.
        x_in = x.astype(jnp.float32)
    else:
        x_in = jnp.zeros((n, dims_pad[0]), jnp.float32).at[:, : dims[0]].set(x)

    vmem = pl.BlockSpec(memory_space=pltpu.MemorySpace.VMEM)
    return pl.pallas_call(
        _make_fused_mlp_kernel(dims, L),
        out_shape=jax.ShapeDtypeStruct((n, dims_pad[-1]), jnp.float32),
        in_specs=[vmem] * (1 + 2 * L),
        out_specs=vmem,
    )(x_in, *padded_params)


def mlp_forward(x, padded_params, dims):
    """Convenience wrapper returning the real (N, d_out) output (module semantics)."""
    return mlp_forward_padded(x, padded_params, dims)[:, : dims[-1]]


# --------------------------- parameter construction ------------------------- #

def init_params(layers, key):
    """Mirror the torch module's init.
       weight: kaiming_normal_(fan_in, relu)  -> std = sqrt(2 / fan_in)
       bias:   nn.Linear default              -> U(-1/sqrt(fan_in), 1/sqrt(fan_in))
       Weights stored transposed as (fin, fout) for x @ W."""
    params = []
    for fin, fout in zip(layers[:-1], layers[1:]):
        key, kw, kb = jax.random.split(key, 3)
        std = (2.0 / fin) ** 0.5
        w = std * jax.random.normal(kw, (fin, fout), jnp.float32)
        bound = 1.0 / (fin ** 0.5)
        b = jax.random.uniform(kb, (1, fout), jnp.float32, -bound, bound)
        params.append((w, b))
    return params


# ------------------------------ pure-JAX reference --------------------------- #

def reference_forward(x, params):
    h = x
    L = len(params)
    for l, (w, b) in enumerate(params):
        h = jnp.dot(h, w, precision=jax.lax.Precision.HIGHEST) + b
        if l < L - 1:
            h = jnp.where(h > 0.0, h, jnp.exp(h) - 1.0)   # CELU(alpha=1)
    return h


# ----------------------------------- main ------------------------------------ #

if __name__ == "__main__":
    Layers = [1, 32, 32, 2]
    N = 64

    key = jax.random.PRNGKey(0)
    k_params, k_x = jax.random.split(key)

    params = init_params(Layers, k_params)
    x = jax.random.normal(k_x, (N, Layers[0]), jnp.float32)

    # One-time parameter preparation (padding hoisted out of the per-call path).
    padded_params, dims = prepare_params(params, Layers[0])

    # Hot path: fused kernel returns the lane-padded block; slice at the consumer.
    out_padded = mlp_forward_padded(x, padded_params, dims)
    out_padded = jax.block_until_ready(out_padded)
    out = out_padded[:, : Layers[-1]]

    ref = reference_forward(x, params)

    assert out.shape == (N, Layers[-1]), out.shape
    assert out.dtype == jnp.float32
    assert jnp.allclose(out, ref, atol=1e-4, rtol=1e-4), float(jnp.max(jnp.abs(out - ref)))
    print("KERNEL_OK")
</pallas_src>

<mosaic_0001>
module attributes {stable_mosaic.version = 11 : i64} {
  func.func @kernel(%arg0: memref<64x1xf32, #tpu.memory_space<vmem>>, %arg1: memref<128x128xf32, #tpu.memory_space<vmem>>, %arg2: memref<1x128xf32, #tpu.memory_space<vmem>>, %arg3: memref<128x128xf32, #tpu.memory_space<vmem>>, %arg4: memref<1x128xf32, #tpu.memory_space<vmem>>, %arg5: memref<128x128xf32, #tpu.memory_space<vmem>>, %arg6: memref<1x128xf32, #tpu.memory_space<vmem>>, %arg7: memref<64x128xf32, #tpu.memory_space<vmem>>) attributes {dimension_semantics = [], scalar_prefetch = 0 : i64, scratch_operands = 0 : i64, tpu.core_type = #tpu.core_type<tc>} {
    %c0 = arith.constant 0 : index
    %c0_0 = arith.constant 0 : index
    %0 = vector.load %arg0[%c0, %c0_0] : memref<64x1xf32, #tpu.memory_space<vmem>>, vector<64x1xf32>
    %c0_1 = arith.constant 0 : index
    %c0_2 = arith.constant 0 : index
    %1 = vector.load %arg1[%c0_1, %c0_2] : memref<128x128xf32, #tpu.memory_space<vmem>>, vector<128x128xf32>
    %c0_3 = arith.constant 0 : index
    %c0_4 = arith.constant 0 : index
    %2 = vector.load %arg2[%c0_3, %c0_4] : memref<1x128xf32, #tpu.memory_space<vmem>>, vector<1x128xf32>
    %3 = vector.extract_strided_slice %1 {offsets = [0, 0], sizes = [1, 128], strides = [1, 1]} : vector<128x128xf32> to vector<1x128xf32>
    %4 = vector.broadcast %0 : vector<64x1xf32> to vector<64x128xf32>
    %5 = vector.broadcast %3 : vector<1x128xf32> to vector<64x128xf32>
    %6 = arith.mulf %4, %5 : vector<64x128xf32>
    %7 = vector.broadcast %2 : vector<1x128xf32> to vector<64x128xf32>
    %8 = arith.addf %6, %7 : vector<64x128xf32>
    %cst = arith.constant 0.000000e+00 : f32
    %9 = vector.broadcast %cst : f32 to vector<64x128xf32>
    %10 = arith.cmpf ogt, %8, %9 : vector<64x128xf32>
    %11 = math.exp %8 : vector<64x128xf32>
    %cst_5 = arith.constant 1.000000e+00 : f32
    %12 = vector.broadcast %cst_5 : f32 to vector<64x128xf32>
    %13 = arith.subf %11, %12 : vector<64x128xf32>
    %14 = arith.select %10, %8, %13 : vector<64x128xi1>, vector<64x128xf32>
    %c0_6 = arith.constant 0 : index
    %c0_7 = arith.constant 0 : index
    %15 = vector.load %arg3[%c0_6, %c0_7] : memref<128x128xf32, #tpu.memory_space<vmem>>, vector<128x128xf32>
    %c0_8 = arith.constant 0 : index
    %c0_9 = arith.constant 0 : index
    %16 = vector.load %arg4[%c0_8, %c0_9] : memref<1x128xf32, #tpu.memory_space<vmem>>, vector<1x128xf32>
    %cst_10 = arith.constant dense<0.000000e+00> : vector<64x128xf32>
    %17 = tpu.matmul %14, %15, %cst_10 {dimension_numbers = #tpu.dot_dimension_numbers<[1], [0], [0], [1], [0, 0, 1, 1], [], []>, precision = #tpu.contract_precision<fp32>} : vector<64x128xf32>, vector<128x128xf32>, vector<64x128xf32> -> vector<64x128xf32>
    %18 = vector.broadcast %16 : vector<1x128xf32> to vector<64x128xf32>
    %19 = arith.addf %17, %18 : vector<64x128xf32>
    %cst_11 = arith.constant 0.000000e+00 : f32
    %20 = vector.broadcast %cst_11 : f32 to vector<64x128xf32>
    %21 = arith.cmpf ogt, %19, %20 : vector<64x128xf32>
    %22 = math.exp %19 : vector<64x128xf32>
    %cst_12 = arith.constant 1.000000e+00 : f32
    %23 = vector.broadcast %cst_12 : f32 to vector<64x128xf32>
    %24 = arith.subf %22, %23 : vector<64x128xf32>
    %25 = arith.select %21, %19, %24 : vector<64x128xi1>, vector<64x128xf32>
    %c0_13 = arith.constant 0 : index
    %c0_14 = arith.constant 0 : index
    %26 = vector.load %arg5[%c0_13, %c0_14] : memref<128x128xf32, #tpu.memory_space<vmem>>, vector<128x128xf32>
    %c0_15 = arith.constant 0 : index
    %c0_16 = arith.constant 0 : index
    %27 = vector.load %arg6[%c0_15, %c0_16] : memref<1x128xf32, #tpu.memory_space<vmem>>, vector<1x128xf32>
    %cst_17 = arith.constant dense<0.000000e+00> : vector<64x128xf32>
    %28 = tpu.matmul %25, %26, %cst_17 {dimension_numbers = #tpu.dot_dimension_numbers<[1], [0], [0], [1], [0, 0, 1, 1], [], []>, precision = #tpu.contract_precision<fp32>} : vector<64x128xf32>, vector<128x128xf32>, vector<64x128xf32> -> vector<64x128xf32>
    %29 = vector.broadcast %27 : vector<1x128xf32> to vector<64x128xf32>
    %30 = arith.addf %28, %29 : vector<64x128xf32>
    %c0_18 = arith.constant 0 : index
    %c0_19 = arith.constant 0 : index
    %31 = vector.load %arg7[%c0_18, %c0_19] : memref<64x128xf32, #tpu.memory_space<vmem>>, vector<64x128xf32>
    tpu.vector_store %arg7[%c0_18, %c0_19], %30 {strides = array<i32>} : memref<64x128xf32, #tpu.memory_space<vmem>>, vector<64x128xf32>,
    return
  }
}

</mosaic_0001>

<llo_original>
// kernel: mlp_forward_padded.1
$region0: #{mlp_forward_padded.1}
  #allocation0 [shape = 'u32[]', space=smem, size = 0x4, offset = 0x4, fixed_abs, tag = 'smem constant byte address 0x4 - core index']
  #allocation1 [shape = 'u32[144,128]{1,0:T(1,128)}', space=vmem, size = 0x12000, scoped, tag = 'internal scratch']
  %s0 = inlined_call_operand.vmem [shape: f32[64,1], index: 0, kind: input, shape index: {}]
  %s1 = inlined_call_operand.hbm [shape: f32[128,128], index: 1, kind: input, shape index: {}]
  %s2 = inlined_call_operand.vmem [shape: f32[1,128], index: 2, kind: input, shape index: {}]
  %s3 = inlined_call_operand.hbm [shape: f32[128,128], index: 3, kind: input, shape index: {}]
  %s4 = inlined_call_operand.vmem [shape: f32[1,128], index: 4, kind: input, shape index: {}]
  %s5 = inlined_call_operand.hbm [shape: f32[128,128], index: 5, kind: input, shape index: {}]
  %s6 = inlined_call_operand.vmem [shape: f32[1,128], index: 6, kind: input, shape index: {}]
  %s7 = inlined_call_operand.hbm [shape: f32[64,128], index: 7, kind: output, shape index: {}]
  %s8 = sld [smem:[#allocation0]]
  $region50: #{mlp_forward_padded.1} parent=0
    _
  %s10 = ssub.s32 1, %s8
  %s11 = scalar_select 0, %s10, %s8
  $region1: #{mlp_forward_padded.1} parent=0
    #allocation2 [shape = 'u8[65536]{0}', space=vmem, size = 0x10000, scoped, tag = 'input window, operand 1, single buffered']
    #allocation3 [shape = 's32[1]{0}', space=sflag, size = 0x4, scoped, tag = 'scoped memory for mlp_forward_padded.1']
    #allocation4 [shape = 's32[1]{0}', space=sflag, size = 0x4, scoped, tag = 'scoped memory for mlp_forward_padded.1']
    #allocation5 [shape = 'u8[65536]{0}', space=vmem, size = 0x10000, scoped, tag = 'input window, operand 3, single buffered']
    #allocation6 [shape = 's32[1]{0}', space=sflag, size = 0x4, scoped, tag = 'scoped memory for mlp_forward_padded.1']
    #allocation7 [shape = 'u8[65536]{0}', space=vmem, size = 0x10000, scoped, tag = 'input window, operand 5, single buffered']
    #allocation8 [shape = 'u8[32768]{0}', space=vmem, size = 0x8000, scoped, tag = 'output window, operand 0, single buffered']
    %12 = vsyncpa [#allocation3], 0
    %13 = vsyncpa [#allocation6], 0
    %14 = vsyncpa [#allocation4], 0
    // Predicated region
    $region2: #{mlp_forward_padded.1} parent=1 // pred_check
      _
    $region3: #{mlp_forward_padded.1} parent=1 // pred_check_branch
      %16 = sbr.rel (0) target = $region5
    $region4: #{mlp_forward_padded.1} parent=1 // pred_region
      _
    $region5: #{mlp_forward_padded.1} parent=1 // pred_fallthru
      _
    // Predicated region
    $region6: #{mlp_forward_padded.1} parent=1 // pred_check
      _
    $region7: #{mlp_forward_padded.1} parent=1 // pred_check_branch
      %18 = sbr.rel (0) target = $region9
    $region8: #{mlp_forward_padded.1} parent=1 // pred_region
      %s20 = ssub.s32 2048, 2048
      %21 = vsyncadd [#allocation3], %s20
      %s22 = sshll.u32 [#allocation2], 4
      %s23 = int_to_ptr.vmem [resolvable:$true] %s22
      %28 = dma.hbm_to_vmem [thread:$0]  %s1, 2048, %s23, [#allocation3], 128, 128, 8
    $region9: #{mlp_forward_padded.1} parent=1 // pred_fallthru
      _
    // Predicated region
    $region10: #{mlp_forward_padded.1} parent=1 // pred_check
      _
    $region11: #{mlp_forward_padded.1} parent=1 // pred_check_branch
      %30 = sbr.rel (0) target = $region13
    $region12: #{mlp_forward_padded.1} parent=1 // pred_region
      _
    $region13: #{mlp_forward_padded.1} parent=1 // pred_fallthru
      _
    // Predicated region
    $region14: #{mlp_forward_padded.1} parent=1 // pred_check
      _
    $region15: #{mlp_forward_padded.1} parent=1 // pred_check_branch
      %32 = sbr.rel (0) target = $region17
    $region16: #{mlp_forward_padded.1} parent=1 // pred_region
      %s34 = ssub.s32 2048, 2048
      %35 = vsyncadd [#allocation6], %s34
      %s36 = sshll.u32 [#allocation5], 4
      %s37 = int_to_ptr.vmem [resolvable:$true] %s36
      %42 = dma.hbm_to_vmem [thread:$0]  %s3, 2048, %s37, [#allocation6], 128, 128, 8
    $region17: #{mlp_forward_padded.1} parent=1 // pred_fallthru
      _
    // Predicated region
    $region18: #{mlp_forward_padded.1} parent=1 // pred_check
      _
    $region19: #{mlp_forward_padded.1} parent=1 // pred_check_branch
      %44 = sbr.rel (0) target = $region21
    $region20: #{mlp_forward_padded.1} parent=1 // pred_region
      _
    $region21: #{mlp_forward_padded.1} parent=1 // pred_fallthru
      _
    // Predicated region
    $region22: #{mlp_forward_padded.1} parent=1 // pred_check
      _
    $region23: #{mlp_forward_padded.1} parent=1 // pred_check_branch
      %46 = sbr.rel (0) target = $region25
    $region24: #{mlp_forward_padded.1} parent=1 // pred_region
      %s48 = ssub.s32 2048, 2048
      %49 = vsyncadd [#allocation6], %s48
      %s50 = sshll.u32 [#allocation7], 4
      %s51 = int_to_ptr.vmem [resolvable:$true] %s50
      %56 = dma.hbm_to_vmem [thread:$0]  %s5, 2048, %s51, [#allocation6], 128, 128, 8
    $region25: #{mlp_forward_padded.1} parent=1 // pred_fallthru
      _
    // Predicated region
    $region26: #{mlp_forward_padded.1} parent=1 // pred_check
      _
    $region27: #{mlp_forward_padded.1} parent=1 // pred_check_branch
      %58 = sbr.rel (0) target = $region29
    $region28: #{mlp_forward_padded.1} parent=1 // pred_region
      _
    $region29: #{mlp_forward_padded.1} parent=1 // pred_fallthru
      _
    // Predicated region
    $region30: #{mlp_forward_padded.1} parent=1 // pred_check
      _
    $region31: #{mlp_forward_padded.1} parent=1 // pred_check_branch
      %60 = sbr.rel (0) target = $region33
    $region32: #{mlp_forward_padded.1} parent=1 // pred_region
      %61 = dma.done [#allocation3], 2048
    $region33: #{mlp_forward_padded.1} parent=1 // pred_fallthru
      _
    // Predicated region
    $region34: #{mlp_forward_padded.1} parent=1 // pred_check
      _
    $region35: #{mlp_forward_padded.1} parent=1 // pred_check_branch
      %63 = sbr.rel (0) target = $region37
    $region36: #{mlp_forward_padded.1} parent=1 // pred_region
      %64 = dma.done [#allocation6], 2048
    $region37: #{mlp_forward_padded.1} parent=1 // pred_fallthru
      _
    // Predicated region
    $region38: #{mlp_forward_padded.1} parent=1 // pred_check
      _
    $region39: #{mlp_forward_padded.1} parent=1 // pred_check_branch
      %66 = sbr.rel (0) target = $region41
    $region40: #{mlp_forward_padded.1} parent=1 // pred_region
      %67 = dma.done [#allocation6], 2048
    $region41: #{mlp_forward_padded.1} parent=1 // pred_fallthru
      _
    %v68 = vld [vmem:[%s0] sm:$0xff]
    %v69 = vld [vmem:[%s0 + $0x8] sm:$0xff]
    %v70 = vld [vmem:[%s0 + $0x10] sm:$0xff]
    %v71 = vld [vmem:[%s0 + $0x18] sm:$0xff]
    %v72 = vld [vmem:[%s0 + $0x20] sm:$0xff]
    %v73 = vld [vmem:[%s0 + $0x28] sm:$0xff]
    %v74 = vld [vmem:[%s0 + $0x30] sm:$0xff]
    %v75 = vld [vmem:[%s0 + $0x38] sm:$0xff]
    %v76 = vld [vmem:[#allocation2] sm:$0xff]
    %v77 = vld [vmem:[%s2] sm:$0x1]
    %79 = vset.pattern.permute.xlu0 0
    %80 = vperm.xlu0 %79, %v68
    %v81 = vpop.permute.xlu0 %80
    %84 = vset.pattern.permute.xlu0 0
    %85 = vperm.xlu0 %84, %v69
    %v86 = vpop.permute.xlu0 %85
    %89 = vset.pattern.permute.xlu0 0
    %90 = vperm.xlu0 %89, %v70
    %v91 = vpop.permute.xlu0 %90
    %94 = vset.pattern.permute.xlu0 0
    %95 = vperm.xlu0 %94, %v71
    %v96 = vpop.permute.xlu0 %95
    %99 = vset.pattern.permute.xlu0 0
    %100 = vperm.xlu0 %99, %v72
    %v101 = vpop.permute.xlu0 %100
    %104 = vset.pattern.permute.xlu0 0
    %105 = vperm.xlu0 %104, %v73
    %v106 = vpop.permute.xlu0 %105
    %109 = vset.pattern.permute.xlu0 0
    %110 = vperm.xlu0 %109, %v74
    %v111 = vpop.permute.xlu0 %110
    %114 = vset.pattern.permute.xlu0 0
    %115 = vperm.xlu0 %114, %v75
    %v116 = vpop.permute.xlu0 %115
    %v118 = vlaneseq
    %v119 = vshrl.u32 %v118, 7
    %v120 = vsub.s32 0, %v119
    %v121 = vrot.slane %v76, %v120
    %v122 = vmul.f32 %v81, %v121
    %v123 = vmul.f32 %v86, %v121
    %v124 = vmul.f32 %v91, %v121
    %v125 = vmul.f32 %v96, %v121
    %v126 = vmul.f32 %v101, %v121
    %v127 = vmul.f32 %v106, %v121
    %v128 = vmul.f32 %v111, %v121
    %v129 = vmul.f32 %v116, %v121
    %v131 = vlaneseq
    %v132 = vshrl.u32 %v131, 7
    %v133 = vsub.s32 0, %v132
    %v134 = vrot.slane %v77, %v133
    %v136 = vadd.f32 %v122, %v134
    %v137 = vadd.f32 %v123, %v134
    %v138 = vadd.f32 %v124, %v134
    %v139 = vadd.f32 %v125, %v134
    %v140 = vadd.f32 %v126, %v134
    %v141 = vadd.f32 %v127, %v134
    %v142 = vadd.f32 %v128, %v134
    %v143 = vadd.f32 %v129, %v134
    %vm144 = vcmp.gt.f32.partialorder %v136, 0.0
    %vm145 = vcmp.gt.f32.partialorder %v137, 0.0
    %vm146 = vcmp.gt.f32.partialorder %v138, 0.0
    %vm147 = vcmp.gt.f32.partialorder %v139, 0.0
    %vm148 = vcmp.gt.f32.partialorder %v140, 0.0
    %vm149 = vcmp.gt.f32.partialorder %v141, 0.0
    %vm150 = vcmp.gt.f32.partialorder %v142, 0.0
    %vm151 = vcmp.gt.f32.partialorder %v143, 0.0
    %v152 = vmul.f32 %v136, 1.442695
    %v153 = vpow.pop %v152
    %v154 = vmul.f32 %v137, 1.442695
    %v155 = vpow.pop %v154
    %v156 = vmul.f32 %v138, 1.442695
    %v157 = vpow.pop %v156
    %v158 = vmul.f32 %v139, 1.442695
    %v159 = vpow.pop %v158
    %v160 = vmul.f32 %v140, 1.442695
    %v161 = vpow.pop %v160
    %v162 = vmul.f32 %v141, 1.442695
    %v163 = vpow.pop %v162
    %v164 = vmul.f32 %v142, 1.442695
    %v165 = vpow.pop %v164
    %v166 = vmul.f32 %v143, 1.442695
    %v167 = vpow.pop %v166
    %v168 = vsub.f32 %v153, 1.0
    %v169 = vsub.f32 %v155, 1.0
    %v170 = vsub.f32 %v157, 1.0
    %v171 = vsub.f32 %v159, 1.0
    %v172 = vsub.f32 %v161, 1.0
    %v173 = vsub.f32 %v163, 1.0
    %v174 = vsub.f32 %v165, 1.0
    %v175 = vsub.f32 %v167, 1.0
    %v176 = vsel %vm144, %v136, %v168
    %v177 = vsel %vm145, %v137, %v169
    %v178 = vsel %vm146, %v138, %v170
    %v179 = vsel %vm147, %v139, %v171
    %v180 = vsel %vm148, %v140, %v172
    %v181 = vsel %vm149, %v141, %v173
    %v182 = vsel %vm150, %v142, %v174
    %v183 = vsel %vm151, %v143, %v175
    %v184 = vld [vmem:[#allocation5] sm:$0xff]
    %v185 = vld [vmem:[#allocation5 + $0x8] sm:$0xff]
    %v186 = vld [vmem:[#allocation5 + $0x10] sm:$0xff]
    %v187 = vld [vmem:[#allocation5 + $0x18] sm:$0xff]
    %v188 = vld [vmem:[#allocation5 + $0x20] sm:$0xff]
    %v189 = vld [vmem:[#allocation5 + $0x28] sm:$0xff]
    %v190 = vld [vmem:[#allocation5 + $0x30] sm:$0xff]
    %v191 = vld [vmem:[#allocation5 + $0x38] sm:$0xff]
    %v192 = vld [vmem:[#allocation5 + $0x40] sm:$0xff]
    %v193 = vld [vmem:[#allocation5 + $0x48] sm:$0xff]
    %v194 = vld [vmem:[#allocation5 + $0x50] sm:$0xff]
    %v195 = vld [vmem:[#allocation5 + $0x58] sm:$0xff]
    %v196 = vld [vmem:[#allocation5 + $0x60] sm:$0xff]
    %v197 = vld [vmem:[#allocation5 + $0x68] sm:$0xff]
    %v198 = vld [vmem:[#allocation5 + $0x70] sm:$0xff]
    %v199 = vld [vmem:[#allocation5 + $0x78] sm:$0xff]
    %v200 = vld [vmem:[%s4] sm:$0x1]
    %v202 = vlaneseq
    %v203 = vshrl.u32 %v202, 7
    %v204 = vsub.s32 0, %v203
    %v205 = vrot.slane %v200, %v204
    %207 = vmatprep.subr.mxu0 0.0
    %v208 = vand.u32 %v184, 4294901760
    %209 = vmatpush1.msra.mxu0 %v208
    %210 = vmatprep.subr.mxu0 0.0
    %v211 = vand.u32 %v185, 4294901760
    %212 = vmatpush1.msra.mxu0 %v211
    %213 = vmatprep.subr.mxu0 0.0
    %v214 = vand.u32 %v186, 4294901760
    %215 = vmatpush1.msra.mxu0 %v214
    %216 = vmatprep.subr.mxu0 0.0
    %v217 = vand.u32 %v187, 4294901760
    %218 = vmatpush1.msra.mxu0 %v217
    %219 = vmatprep.subr.mxu0 0.0
    %v220 = vand.u32 %v188, 4294901760
    %221 = vmatpush1.msra.mxu0 %v220
    %222 = vmatprep.subr.mxu0 0.0
    %v223 = vand.u32 %v189, 4294901760
    %224 = vmatpush1.msra.mxu0 %v223
    %225 = vmatprep.subr.mxu0 0.0
    %v226 = vand.u32 %v190, 4294901760
    %227 = vmatpush1.msra.mxu0 %v226
    %228 = vmatprep.subr.mxu0 0.0
    %v229 = vand.u32 %v191, 4294901760
    %230 = vmatpush1.msra.mxu0 %v229
    %231 = vmatprep.subr.mxu0 0.0
    %v232 = vand.u32 %v192, 4294901760
    %233 = vmatpush1.msra.mxu0 %v232
    %234 = vmatprep.subr.mxu0 0.0
    %v235 = vand.u32 %v193, 4294901760
    %236 = vmatpush1.msra.mxu0 %v235
    %237 = vmatprep.subr.mxu0 0.0
    %v238 = vand.u32 %v194, 4294901760
    %239 = vmatpush1.msra.mxu0 %v238
    %240 = vmatprep.subr.mxu0 0.0
    %v241 = vand.u32 %v195, 4294901760
    %242 = vmatpush1.msra.mxu0 %v241
    %243 = vmatprep.subr.mxu0 0.0
    %v244 = vand.u32 %v196, 4294901760
    %245 = vmatpush1.msra.mxu0 %v244
    %246 = vmatprep.subr.mxu0 0.0
    %v247 = vand.u32 %v197, 4294901760
    %248 = vmatpush1.msra.mxu0 %v247
    %249 = vmatprep.subr.mxu0 0.0
    %v250 = vand.u32 %v198, 4294901760
    %251 = vmatpush1.msra.mxu0 %v250
    %252 = vmatprep.subr.mxu0 0.0
    %v253 = vand.u32 %v199, 4294901760
    %254 = vmatpush1.msra.mxu0 %v253
    %255 = vmatprep.subr.mxu0 0.0
    %256 = vmatpush1.msra.mxu0 0.0
    %257 = vmatprep.subr.mxu0 0.0
    %258 = vmatpush1.msra.mxu0 0.0
    %259 = vmatprep.subr.mxu0 0.0
    %260 = vmatpush1.msra.mxu0 0.0
    %261 = vmatprep.subr.mxu0 0.0
    %262 = vmatpush1.msra.mxu0 0.0
    %263 = vmatprep.subr.mxu0 0.0
    %264 = vmatpush1.msra.mxu0 0.0
    %265 = vmatprep.subr.mxu0 0.0
    %266 = vmatpush1.msra.mxu0 0.0
    %267 = vmatprep.subr.mxu0 0.0
    %268 = vmatpush1.msra.mxu0 0.0
    %269 = vmatprep.subr.mxu0 0.0
    %270 = vmatpush1.msra.mxu0 0.0
    %271 = vmatprep.subr.mxu0 0.0
    %272 = vmatpush1.msra.mxu0 0.0
    %273 = vmatprep.subr.mxu0 0.0
    %274 = vmatpush1.msra.mxu0 0.0
    %275 = vmatprep.subr.mxu0 0.0
    %276 = vmatpush1.msra.mxu0 0.0
    %277 = vmatprep.subr.mxu0 0.0
    %278 = vmatpush1.msra.mxu0 0.0
    %279 = vmatprep.subr.mxu0 0.0
    %280 = vmatpush1.msra.mxu0 0.0
    %281 = vmatprep.subr.mxu0 0.0
    %282 = vmatpush1.msra.mxu0 0.0
    %283 = vmatprep.subr.mxu0 0.0
    %284 = vmatpush1.msra.mxu0 0.0
    %285 = vmatprep.subr.mxu0 0.0
    %286 = vmatpush1.msra.mxu0 0.0
    %287 = vmatprep.mubr.f32.mxu0 0.0
    %v288 = vand.u32 %v176, 4294901760
    %v289 = vsub.f32 %v176, %v288
    %v290 = vand.u32 %v289, 4294901760
    %v291 = vsub.f32 %v289, %v290
    %v292 = vand.u32 %v291, 4294901760
    %293 = vmatmul.mubr.f32.gmra.mrb[0].mxu0 %v292
    %v294 = vpop.f32.mrb[0].mxu0
    %v295 = vadd.f32 %v205, %v294
    %v296 = vpop.f32.mrb[0].mxu0
    %297 = vmatprep.mubr.f32.mxu0 0.0
    %v298 = vand.u32 %v177, 4294901760
    %v299 = vsub.f32 %v177, %v298
    %v300 = vand.u32 %v299, 4294901760
    %v301 = vsub.f32 %v299, %v300
    %v302 = vand.u32 %v301, 4294901760
    %303 = vmatmul.mubr.f32.gmra.mrb[0].mxu0 %v302
    %v304 = vpop.f32.mrb[0].mxu0
    %v305 = vadd.f32 %v205, %v304
    %v306 = vpop.f32.mrb[0].mxu0
    %307 = vmatprep.mubr.f32.mxu0 0.0
    %v308 = vand.u32 %v178, 4294901760
    %v309 = vsub.f32 %v178, %v308
    %v310 = vand.u32 %v309, 4294901760
    %v311 = vsub.f32 %v309, %v310
    %v312 = vand.u32 %v311, 4294901760
    %313 = vmatmul.mubr.f32.gmra.mrb[0].mxu0 %v312
    %v314 = vpop.f32.mrb[0].mxu0
    %v315 = vadd.f32 %v205, %v314
    %v316 = vpop.f32.mrb[0].mxu0
    %317 = vmatprep.mubr.f32.mxu0 0.0
    %v318 = vand.u32 %v179, 4294901760
    %v319 = vsub.f32 %v179, %v318
    %v320 = vand.u32 %v319, 4294901760
    %v321 = vsub.f32 %v319, %v320
    %v322 = vand.u32 %v321, 4294901760
    %323 = vmatmul.mubr.f32.gmra.mrb[0].mxu0 %v322
    %v324 = vpop.f32.mrb[0].mxu0
    %v325 = vadd.f32 %v205, %v324
    %v326 = vpop.f32.mrb[0].mxu0
    %327 = vmatprep.mubr.f32.mxu0 0.0
    %v328 = vand.u32 %v180, 4294901760
    %v329 = vsub.f32 %v180, %v328
    %v330 = vand.u32 %v329, 4294901760
    %v331 = vsub.f32 %v329, %v330
    %v332 = vand.u32 %v331, 4294901760
    %333 = vmatmul.mubr.f32.gmra.mrb[0].mxu0 %v332
    %v334 = vpop.f32.mrb[0].mxu0
    %v335 = vadd.f32 %v205, %v334
    %v336 = vpop.f32.mrb[0].mxu0
    %337 = vmatprep.mubr.f32.mxu0 0.0
    %v338 = vand.u32 %v181, 4294901760
    %v339 = vsub.f32 %v181, %v338
    %v340 = vand.u32 %v339, 4294901760
    %v341 = vsub.f32 %v339, %v340
    %v342 = vand.u32 %v341, 4294901760
    %343 = vmatmul.mubr.f32.gmra.mrb[0].mxu0 %v342
    %v344 = vpop.f32.mrb[0].mxu0
    %v345 = vadd.f32 %v205, %v344
    %v346 = vpop.f32.mrb[0].mxu0
    %347 = vmatprep.mubr.f32.mxu0 0.0
    %v348 = vand.u32 %v182, 4294901760
    %v349 = vsub.f32 %v182, %v348
    %v350 = vand.u32 %v349, 4294901760
    %v351 = vsub.f32 %v349, %v350
    %v352 = vand.u32 %v351, 4294901760
    %353 = vmatmul.mubr.f32.gmra.mrb[0].mxu0 %v352
    %v354 = vpop.f32.mrb[0].mxu0
    %v355 = vadd.f32 %v205, %v354
    %v356 = vpop.f32.mrb[0].mxu0
    %357 = vmatprep.mubr.f32.mxu0 0.0
    %v358 = vand.u32 %v183, 4294901760
    %v359 = vsub.f32 %v183, %v358
    %v360 = vand.u32 %v359, 4294901760
    %v361 = vsub.f32 %v359, %v360
    %v362 = vand.u32 %v361, 4294901760
    %363 = vmatmul.mubr.f32.gmra.mrb[0].mxu0 %v362
    %v364 = vpop.f32.mrb[0].mxu0
    %v365 = vadd.f32 %v205, %v364
    %v366 = vpop.f32.mrb[0].mxu0
    %367 = vdwg.mxu0
    %368 = vmatprep.subr.mxu0 0.0
    %v369 = vand.u32 %v184, 4294901760
    %v370 = vsub.f32 %v184, %v369
    %v371 = vand.u32 %v370, 4294901760
    %v372 = vsub.f32 %v370, %v371
    %v373 = vand.u32 %v372, 4294901760
    %374 = vmatpush1.msra.mxu0 %v373
    %375 = vmatprep.subr.mxu0 0.0
    %v376 = vand.u32 %v185, 4294901760
    %v377 = vsub.f32 %v185, %v376
    %v378 = vand.u32 %v377, 4294901760
    %v379 = vsub.f32 %v377, %v378
    %v380 = vand.u32 %v379, 4294901760
    %381 = vmatpush1.msra.mxu0 %v380
    %382 = vmatprep.subr.mxu0 0.0
    %v383 = vand.u32 %v186, 4294901760
    %v384 = vsub.f32 %v186, %v383
    %v385 = vand.u32 %v384, 4294901760
    %v386 = vsub.f32 %v384, %v385
    %v387 = vand.u32 %v386, 4294901760
    %388 = vmatpush1.msra.mxu0 %v387
    %389 = vmatprep.subr.mxu0 0.0
    %v390 = vand.u32 %v187, 4294901760
    %v391 = vsub.f32 %v187, %v390
    %v392 = vand.u32 %v391, 4294901760
    %v393 = vsub.f32 %v391, %v392
    %v394 = vand.u32 %v393, 4294901760
    %395 = vmatpush1.msra.mxu0 %v394
    %396 = vmatprep.subr.mxu0 0.0
    %v397 = vand.u32 %v188, 4294901760
    %v398 = vsub.f32 %v188, %v397
    %v399 = vand.u32 %v398, 4294901760
    %v400 = vsub.f32 %v398, %v399
    %v401 = vand.u32 %v400, 4294901760
    %402 = vmatpush1.msra.mxu0 %v401
    %403 = vmatprep.subr.mxu0 0.0
    %v404 = vand.u32 %v189, 4294901760
    %v405 = vsub.f32 %v189, %v404
    %v406 = vand.u32 %v405, 4294901760
    %v407 = vsub.f32 %v405, %v406
    %v408 = vand.u32 %v407, 4294901760
    %409 = vmatpush1.msra.mxu0 %v408
    %410 = vmatprep.subr.mxu0 0.0
    %v411 = vand.u32 %v190, 4294901760
    %v412 = vsub.f32 %v190, %v411
    %v413 = vand.u32 %v412, 4294901760
    %v414 = vsub.f32 %v412, %v413
    %v415 = vand.u32 %v414, 4294901760
    %416 = vmatpush1.msra.mxu0 %v415
    %417 = vmatprep.subr.mxu0 0.0
    %v418 = vand.u32 %v191, 4294901760
    %v419 = vsub.f32 %v191, %v418
    %v420 = vand.u32 %v419, 4294901760
    %v421 = vsub.f32 %v419, %v420
    %v422 = vand.u32 %v421, 4294901760
    %423 = vmatpush1.msra.mxu0 %v422
    %424 = vmatprep.subr.mxu0 0.0
    %v425 = vand.u32 %v192, 4294901760
    %v426 = vsub.f32 %v192, %v425
    %v427 = vand.u32 %v426, 4294901760
    %v428 = vsub.f32 %v426, %v427
    %v429 = vand.u32 %v428, 4294901760
    %430 = vmatpush1.msra.mxu0 %v429
    %431 = vmatprep.subr.mxu0 0.0
    %v432 = vand.u32 %v193, 4294901760
    %v433 = vsub.f32 %v193, %v432
    %v434 = vand.u32 %v433, 4294901760
    %v435 = vsub.f32 %v433, %v434
    %v436 = vand.u32 %v435, 4294901760
    %437 = vmatpush1.msra.mxu0 %v436
    %438 = vmatprep.subr.mxu0 0.0
    %v439 = vand.u32 %v194, 4294901760
    %v440 = vsub.f32 %v194, %v439
    %v441 = vand.u32 %v440, 4294901760
    %v442 = vsub.f32 %v440, %v441
    %v443 = vand.u32 %v442, 4294901760
    %444 = vmatpush1.msra.mxu0 %v443
    %445 = vmatprep.subr.mxu0 0.0
    %v446 = vand.u32 %v195, 4294901760
    %v447 = vsub.f32 %v195, %v446
    %v448 = vand.u32 %v447, 4294901760
    %v449 = vsub.f32 %v447, %v448
    %v450 = vand.u32 %v449, 4294901760
    %451 = vmatpush1.msra.mxu0 %v450
    %452 = vmatprep.subr.mxu0 0.0
    %v453 = vand.u32 %v196, 4294901760
    %v454 = vsub.f32 %v196, %v453
    %v455 = vand.u32 %v454, 4294901760
    %v456 = vsub.f32 %v454, %v455
    %v457 = vand.u32 %v456, 4294901760
    %458 = vmatpush1.msra.mxu0 %v457
    %459 = vmatprep.subr.mxu0 0.0
    %v460 = vand.u32 %v197, 4294901760
    %v461 = vsub.f32 %v197, %v460
    %v462 = vand.u32 %v461, 4294901760
    %v463 = vsub.f32 %v461, %v462
    %v464 = vand.u32 %v463, 4294901760
    %465 = vmatpush1.msra.mxu0 %v464
    %466 = vmatprep.subr.mxu0 0.0
    %v467 = vand.u32 %v198, 4294901760
    %v468 = vsub.f32 %v198, %v467
    %v469 = vand.u32 %v468, 4294901760
    %v470 = vsub.f32 %v468, %v469
    %v471 = vand.u32 %v470, 4294901760
    %472 = vmatpush1.msra.mxu0 %v471
    %473 = vmatprep.subr.mxu0 0.0
    %v474 = vand.u32 %v199, 4294901760
    %v475 = vsub.f32 %v199, %v474
    %v476 = vand.u32 %v475, 4294901760
    %v477 = vsub.f32 %v475, %v476
    %v478 = vand.u32 %v477, 4294901760
    %479 = vmatpush1.msra.mxu0 %v478
    %480 = vmatprep.subr.mxu0 0.0
    %481 = vmatpush1.msra.mxu0 0.0
    %482 = vmatprep.subr.mxu0 0.0
    %483 = vmatpush1.msra.mxu0 0.0
    %484 = vmatprep.subr.mxu0 0.0
    %485 = vmatpush1.msra.mxu0 0.0
    %486 = vmatprep.subr.mxu0 0.0
    %487 = vmatpush1.msra.mxu0 0.0
    %488 = vmatprep.subr.mxu0 0.0
    %489 = vmatpush1.msra.mxu0 0.0
    %490 = vmatprep.subr.mxu0 0.0
    %491 = vmatpush1.msra.mxu0 0.0
    %492 = vmatprep.subr.mxu0 0.0
    %493 = vmatpush1.msra.mxu0 0.0
    %494 = vmatprep.subr.mxu0 0.0
    %495 = vmatpush1.msra.mxu0 0.0
    %496 = vmatprep.subr.mxu0 0.0
    %497 = vmatpush1.msra.mxu0 0.0
    %498 = vmatprep.subr.mxu0 0.0
    %499 = vmatpush1.msra.mxu0 0.0
    %500 = vmatprep.subr.mxu0 0.0
    %501 = vmatpush1.msra.mxu0 0.0
    %502 = vmatprep.subr.mxu0 0.0
    %503 = vmatpush1.msra.mxu0 0.0
    %504 = vmatprep.subr.mxu0 0.0
    %505 = vmatpush1.msra.mxu0 0.0
    %506 = vmatprep.subr.mxu0 0.0
    %507 = vmatpush1.msra.mxu0 0.0
    %508 = vmatprep.subr.mxu0 0.0
    %509 = vmatpush1.msra.mxu0 0.0
    %510 = vmatprep.subr.mxu0 0.0
    %511 = vmatpush1.msra.mxu0 0.0
    %512 = vmatprep.mubr.f32.mxu0 0.0
    %v513 = vand.u32 %v176, 4294901760
    %514 = vmatmul.mubr.f32.gmra.mrb[0].mxu0 %v513
    %v515 = vpop.f32.mrb[0].mxu0
    %v516 = vadd.f32 %v295, %v515
    %v517 = vpop.f32.mrb[0].mxu0
    %518 = vmatprep.mubr.f32.mxu0 0.0
    %v519 = vand.u32 %v177, 4294901760
    %520 = vmatmul.mubr.f32.gmra.mrb[0].mxu0 %v519
    %v521 = vpop.f32.mrb[0].mxu0
    %v522 = vadd.f32 %v305, %v521
    %v523 = vpop.f32.mrb[0].mxu0
    %524 = vmatprep.mubr.f32.mxu0 0.0
    %v525 = vand.u32 %v178, 4294901760
    %526 = vmatmul.mubr.f32.gmra.mrb[0].mxu0 %v525
    %v527 = vpop.f32.mrb[0].mxu0
    %v528 = vadd.f32 %v315, %v527
    %v529 = vpop.f32.mrb[0].mxu0
    %530 = vmatprep.mubr.f32.mxu0 0.0
    %v531 = vand.u32 %v179, 4294901760
    %532 = vmatmul.mubr.f32.gmra.mrb[0].mxu0 %v531
    %v533 = vpop.f32.mrb[0].mxu0
    %v534 = vadd.f32 %v325, %v533
    %v535 = vpop.f32.mrb[0].mxu0
    %536 = vmatprep.mubr.f32.mxu0 0.0
    %v537 = vand.u32 %v180, 4294901760
    %538 = vmatmul.mubr.f32.gmra.mrb[0].mxu0 %v537
    %v539 = vpop.f32.mrb[0].mxu0
    %v540 = vadd.f32 %v335, %v539
    %v541 = vpop.f32.mrb[0].mxu0
    %542 = vmatprep.mubr.f32.mxu0 0.0
    %v543 = vand.u32 %v181, 4294901760
    %544 = vmatmul.mubr.f32.gmra.mrb[0].mxu0 %v543
    %v545 = vpop.f32.mrb[0].mxu0
    %v546 = vadd.f32 %v345, %v545
    %v547 = vpop.f32.mrb[0].mxu0
    %548 = vmatprep.mubr.f32.mxu0 0.0
    %v549 = vand.u32 %v182, 4294901760
    %550 = vmatmul.mubr.f32.gmra.mrb[0].mxu0 %v549
    %v551 = vpop.f32.mrb[0].mxu0
    %v552 = vadd.f32 %v355, %v551
    %v553 = vpop.f32.mrb[0].mxu0
    %554 = vmatprep.mubr.f32.mxu0 0.0
    %v555 = vand.u32 %v183, 4294901760
    %556 = vmatmul.mubr.f32.gmra.mrb[0].mxu0 %v555
    %v557 = vpop.f32.mrb[0].mxu0
    %v558 = vadd.f32 %v365, %v557
    %v559 = vpop.f32.mrb[0].mxu0
    %560 = vdwg.mxu0
    %561 = vmatprep.subr.mxu0 0.0
    %v562 = vand.u32 %v184, 4294901760
    %v563 = vsub.f32 %v184, %v562
    %564 = vmatpush1.msra.mxu0 %v563
    %565 = vmatprep.subr.mxu0 0.0
    %v566 = vand.u32 %v185, 4294901760
    %v567 = vsub.f32 %v185, %v566
    %568 = vmatpush1.msra.mxu0 %v567
    %569 = vmatprep.subr.mxu0 0.0
    %v570 = vand.u32 %v186, 4294901760
    %v571 = vsub.f32 %v186, %v570
    %572 = vmatpush1.msra.mxu0 %v571
    %573 = vmatprep.subr.mxu0 0.0
    %v574 = vand.u32 %v187, 4294901760
    %v575 = vsub.f32 %v187, %v574
    %576 = vmatpush1.msra.mxu0 %v575
    %577 = vmatprep.subr.mxu0 0.0
    %v578 = vand.u32 %v188, 4294901760
    %v579 = vsub.f32 %v188, %v578
    %580 = vmatpush1.msra.mxu0 %v579
    %581 = vmatprep.subr.mxu0 0.0
    %v582 = vand.u32 %v189, 4294901760
    %v583 = vsub.f32 %v189, %v582
    %584 = vmatpush1.msra.mxu0 %v583
    %585 = vmatprep.subr.mxu0 0.0
    %v586 = vand.u32 %v190, 4294901760
    %v587 = vsub.f32 %v190, %v586
    %588 = vmatpush1.msra.mxu0 %v587
    %589 = vmatprep.subr.mxu0 0.0
    %v590 = vand.u32 %v191, 4294901760
    %v591 = vsub.f32 %v191, %v590
    %592 = vmatpush1.msra.mxu0 %v591
    %593 = vmatprep.subr.mxu0 0.0
    %v594 = vand.u32 %v192, 4294901760
    %v595 = vsub.f32 %v192, %v594
    %596 = vmatpush1.msra.mxu0 %v595
    %597 = vmatprep.subr.mxu0 0.0
    %v598 = vand.u32 %v193, 4294901760
    %v599 = vsub.f32 %v193, %v598
    %600 = vmatpush1.msra.mxu0 %v599
    %601 = vmatprep.subr.mxu0 0.0
    %v602 = vand.u32 %v194, 4294901760
    %v603 = vsub.f32 %v194, %v602
    %604 = vmatpush1.msra.mxu0 %v603
    %605 = vmatprep.subr.mxu0 0.0
    %v606 = vand.u32 %v195, 4294901760
    %v607 = vsub.f32 %v195, %v606
    %608 = vmatpush1.msra.mxu0 %v607
    %609 = vmatprep.subr.mxu0 0.0
    %v610 = vand.u32 %v196, 4294901760
    %v611 = vsub.f32 %v196, %v610
    %612 = vmatpush1.msra.mxu0 %v611
    %613 = vmatprep.subr.mxu0 0.0
    %v614 = vand.u32 %v197, 4294901760
    %v615 = vsub.f32 %v197, %v614
    %616 = vmatpush1.msra.mxu0 %v615
    %617 = vmatprep.subr.mxu0 0.0
    %v618 = vand.u32 %v198, 4294901760
    %v619 = vsub.f32 %v198, %v618
    %620 = vmatpush1.msra.mxu0 %v619
    %621 = vmatprep.subr.mxu0 0.0
    %v622 = vand.u32 %v199, 4294901760
    %v623 = vsub.f32 %v199, %v622
    %624 = vmatpush1.msra.mxu0 %v623
    %625 = vmatprep.subr.mxu0 0.0
    %626 = vmatpush1.msra.mxu0 0.0
    %627 = vmatprep.subr.mxu0 0.0
    %628 = vmatpush1.msra.mxu0 0.0
    %629 = vmatprep.subr.mxu0 0.0
    %630 = vmatpush1.msra.mxu0 0.0
    %631 = vmatprep.subr.mxu0 0.0
    %632 = vmatpush1.msra.mxu0 0.0
    %633 = vmatprep.subr.mxu0 0.0
    %634 = vmatpush1.msra.mxu0 0.0
    %635 = vmatprep.subr.mxu0 0.0
    %636 = vmatpush1.msra.mxu0 0.0
    %637 = vmatprep.subr.mxu0 0.0
    %638 = vmatpush1.msra.mxu0 0.0
    %639 = vmatprep.subr.mxu0 0.0
    %640 = vmatpush1.msra.mxu0 0.0
    %641 = vmatprep.subr.mxu0 0.0
    %642 = vmatpush1.msra.mxu0 0.0
    %643 = vmatprep.subr.mxu0 0.0
    %644 = vmatpush1.msra.mxu0 0.0
    %645 = vmatprep.subr.mxu0 0.0
    %646 = vmatpush1.msra.mxu0 0.0
    %647 = vmatprep.subr.mxu0 0.0
    %648 = vmatpush1.msra.mxu0 0.0
    %649 = vmatprep.subr.mxu0 0.0
    %650 = vmatpush1.msra.mxu0 0.0
    %651 = vmatprep.subr.mxu0 0.0
    %652 = vmatpush1.msra.mxu0 0.0
    %653 = vmatprep.subr.mxu0 0.0
    %654 = vmatpush1.msra.mxu0 0.0
    %655 = vmatprep.subr.mxu0 0.0
    %656 = vmatpush1.msra.mxu0 0.0
    %657 = vmatprep.mubr.f32.mxu0 0.0
    %v658 = vand.u32 %v176, 4294901760
    %v659 = vsub.f32 %v176, %v658
    %660 = vmatmul.mubr.f32.gmra.mrb[0].mxu0 %v659
    %v661 = vpop.f32.mrb[0].mxu0
    %v662 = vadd.f32 %v516, %v661
    %v663 = vpop.f32.mrb[0].mxu0
    %664 = vmatprep.mubr.f32.mxu0 0.0
    %v665 = vand.u32 %v177, 4294901760
    %v666 = vsub.f32 %v177, %v665
    %667 = vmatmul.mubr.f32.gmra.mrb[0].mxu0 %v666
    %v668 = vpop.f32.mrb[0].mxu0
    %v669 = vadd.f32 %v522, %v668
    %v670 = vpop.f32.mrb[0].mxu0
    %671 = vmatprep.mubr.f32.mxu0 0.0
    %v672 = vand.u32 %v178, 4294901760
    %v673 = vsub.f32 %v178, %v672
    %674 = vmatmul.mubr.f32.gmra.mrb[0].mxu0 %v673
    %v675 = vpop.f32.mrb[0].mxu0
    %v676 = vadd.f32 %v528, %v675
    %v677 = vpop.f32.mrb[0].mxu0
    %678 = vmatprep.mubr.f32.mxu0 0.0
    %v679 = vand.u32 %v179, 4294901760
    %v680 = vsub.f32 %v179, %v679
    %681 = vmatmul.mubr.f32.gmra.mrb[0].mxu0 %v680
    %v682 = vpop.f32.mrb[0].mxu0
    %v683 = vadd.f32 %v534, %v682
    %v684 = vpop.f32.mrb[0].mxu0
    %685 = vmatprep.mubr.f32.mxu0 0.0
    %v686 = vand.u32 %v180, 4294901760
    %v687 = vsub.f32 %v180, %v686
    %688 = vmatmul.mubr.f32.gmra.mrb[0].mxu0 %v687
    %v689 = vpop.f32.mrb[0].mxu0
    %v690 = vadd.f32 %v540, %v689
    %v691 = vpop.f32.mrb[0].mxu0
    %692 = vmatprep.mubr.f32.mxu0 0.0
    %v693 = vand.u32 %v181, 4294901760
    %v694 = vsub.f32 %v181, %v693
    %695 = vmatmul.mubr.f32.gmra.mrb[0].mxu0 %v694
    %v696 = vpop.f32.mrb[0].mxu0
    %v697 = vadd.f32 %v546, %v696
    %v698 = vpop.f32.mrb[0].mxu0
    %699 = vmatprep.mubr.f32.mxu0 0.0
    %v700 = vand.u32 %v182, 4294901760
    %v701 = vsub.f32 %v182, %v700
    %702 = vmatmul.mubr.f32.gmra.mrb[0].mxu0 %v701
    %v703 = vpop.f32.mrb[0].mxu0
    %v704 = vadd.f32 %v552, %v703
    %v705 = vpop.f32.mrb[0].mxu0
    %706 = vmatprep.mubr.f32.mxu0 0.0
    %v707 = vand.u32 %v183, 4294901760
    %v708 = vsub.f32 %v183, %v707
    %709 = vmatmul.mubr.f32.gmra.mrb[0].mxu0 %v708
    %v710 = vpop.f32.mrb[0].mxu0
    %v711 = vadd.f32 %v558, %v710
    %v712 = vpop.f32.mrb[0].mxu0
    %713 = vdwg.mxu0
    %714 = vmatprep.subr.mxu0 0.0
    %v715 = vand.u32 %v184, 4294901760
    %716 = vmatpush1.msra.mxu0 %v715
    %717 = vmatprep.subr.mxu0 0.0
    %v718 = vand.u32 %v185, 4294901760
    %719 = vmatpush1.msra.mxu0 %v718
    %720 = vmatprep.subr.mxu0 0.0
    %v721 = vand.u32 %v186, 4294901760
    %722 = vmatpush1.msra.mxu0 %v721
    %723 = vmatprep.subr.mxu0 0.0
    %v724 = vand.u32 %v187, 4294901760
    %725 = vmatpush1.msra.mxu0 %v724
    %726 = vmatprep.subr.mxu0 0.0
    %v727 = vand.u32 %v188, 4294901760
    %728 = vmatpush1.msra.mxu0 %v727
    %729 = vmatprep.subr.mxu0 0.0
    %v730 = vand.u32 %v189, 4294901760
    %731 = vmatpush1.msra.mxu0 %v730
    %732 = vmatprep.subr.mxu0 0.0
    %v733 = vand.u32 %v190, 4294901760
    %734 = vmatpush1.msra.mxu0 %v733
    %735 = vmatprep.subr.mxu0 0.0
    %v736 = vand.u32 %v191, 4294901760
    %737 = vmatpush1.msra.mxu0 %v736
    %738 = vmatprep.subr.mxu0 0.0
    %v739 = vand.u32 %v192, 4294901760
    %740 = vmatpush1.msra.mxu0 %v739
    %741 = vmatprep.subr.mxu0 0.0
    %v742 = vand.u32 %v193, 4294901760
    %743 = vmatpush1.msra.mxu0 %v742
    %744 = vmatprep.subr.mxu0 0.0
    %v745 = vand.u32 %v194, 4294901760
    %746 = vmatpush1.msra.mxu0 %v745
    %747 = vmatprep.subr.mxu0 0.0
    %v748 = vand.u32 %v195, 4294901760
    %749 = vmatpush1.msra.mxu0 %v748
    %750 = vmatprep.subr.mxu0 0.0
    %v751 = vand.u32 %v196, 4294901760
    %752 = vmatpush1.msra.mxu0 %v751
    %753 = vmatprep.subr.mxu0 0.0
    %v754 = vand.u32 %v197, 4294901760
    %755 = vmatpush1.msra.mxu0 %v754
    %756 = vmatprep.subr.mxu0 0.0
    %v757 = vand.u32 %v198, 4294901760
    %758 = vmatpush1.msra.mxu0 %v757
    %759 = vmatprep.subr.mxu0 0.0
    %v760 = vand.u32 %v199, 4294901760
    %761 = vmatpush1.msra.mxu0 %v760
    %762 = vmatprep.subr.mxu0 0.0
    %763 = vmatpush1.msra.mxu0 0.0
    %764 = vmatprep.subr.mxu0 0.0
    %765 = vmatpush1.msra.mxu0 0.0
    %766 = vmatprep.subr.mxu0 0.0
    %767 = vmatpush1.msra.mxu0 0.0
    %768 = vmatprep.subr.mxu0 0.0
    %769 = vmatpush1.msra.mxu0 0.0
    %770 = vmatprep.subr.mxu0 0.0
    %771 = vmatpush1.msra.mxu0 0.0
    %772 = vmatprep.subr.mxu0 0.0
    %773 = vmatpush1.msra.mxu0 0.0
    %774 = vmatprep.subr.mxu0 0.0
    %775 = vmatpush1.msra.mxu0 0.0
    %776 = vmatprep.subr.mxu0 0.0
    %777 = vmatpush1.msra.mxu0 0.0
    %778 = vmatprep.subr.mxu0 0.0
    %779 = vmatpush1.msra.mxu0 0.0
    %780 = vmatprep.subr.mxu0 0.0
    %781 = vmatpush1.msra.mxu0 0.0
    %782 = vmatprep.subr.mxu0 0.0
    %783 = vmatpush1.msra.mxu0 0.0
    %784 = vmatprep.subr.mxu0 0.0
    %785 = vmatpush1.msra.mxu0 0.0
    %786 = vmatprep.subr.mxu0 0.0
    %787 = vmatpush1.msra.mxu0 0.0
    %788 = vmatprep.subr.mxu0 0.0
    %789 = vmatpush1.msra.mxu0 0.0
    %790 = vmatprep.subr.mxu0 0.0
    %791 = vmatpush1.msra.mxu0 0.0
    %792 = vmatprep.subr.mxu0 0.0
    %793 = vmatpush1.msra.mxu0 0.0
    %794 = vmatprep.mubr.f32.mxu0 0.0
    %v795 = vand.u32 %v176, 4294901760
    %v796 = vsub.f32 %v176, %v795
    %v797 = vand.u32 %v796, 4294901760
    %798 = vmatmul.mubr.f32.gmra.mrb[0].mxu0 %v797
    %v799 = vpop.f32.mrb[0].mxu0
    %v800 = vadd.f32 %v662, %v799
    %v801 = vpop.f32.mrb[0].mxu0
    %802 = vmatprep.mubr.f32.mxu0 0.0
    %v803 = vand.u32 %v177, 4294901760
    %v804 = vsub.f32 %v177, %v803
    %v805 = vand.u32 %v804, 4294901760
    %806 = vmatmul.mubr.f32.gmra.mrb[0].mxu0 %v805
    %v807 = vpop.f32.mrb[0].mxu0
    %v808 = vadd.f32 %v669, %v807
    %v809 = vpop.f32.mrb[0].mxu0
    %810 = vmatprep.mubr.f32.mxu0 0.0
    %v811 = vand.u32 %v178, 4294901760
    %v812 = vsub.f32 %v178, %v811
    %v813 = vand.u32 %v812, 4294901760
    %814 = vmatmul.mubr.f32.gmra.mrb[0].mxu0 %v813
    %v815 = vpop.f32.mrb[0].mxu0
    %v816 = vadd.f32 %v676, %v815
    %v817 = vpop.f32.mrb[0].mxu0
    %818 = vmatprep.mubr.f32.mxu0 0.0
    %v819 = vand.u32 %v179, 4294901760
    %v820 = vsub.f32 %v179, %v819
    %v821 = vand.u32 %v820, 4294901760
    %822 = vmatmul.mubr.f32.gmra.mrb[0].mxu0 %v821
    %v823 = vpop.f32.mrb[0].mxu0
    %v824 = vadd.f32 %v683, %v823
    %v825 = vpop.f32.mrb[0].mxu0
    %826 = vmatprep.mubr.f32.mxu0 0.0
    %v827 = vand.u32 %v180, 4294901760
    %v828 = vsub.f32 %v180, %v827
    %v829 = vand.u32 %v828, 4294901760
    %830 = vmatmul.mubr.f32.gmra.mrb[0].mxu0 %v829
    %v831 = vpop.f32.mrb[0].mxu0
    %v832 = vadd.f32 %v690, %v831
    %v833 = vpop.f32.mrb[0].mxu0
    %834 = vmatprep.mubr.f32.mxu0 0.0
    %v835 = vand.u32 %v181, 4294901760
    %v836 = vsub.f32 %v181, %v835
    %v837 = vand.u32 %v836, 4294901760
    %838 = vmatmul.mubr.f32.gmra.mrb[0].mxu0 %v837
    %v839 = vpop.f32.mrb[0].mxu0
    %v840 = vadd.f32 %v697, %v839
    %v841 = vpop.f32.mrb[0].mxu0
    %842 = vmatprep.mubr.f32.mxu0 0.0
    %v843 = vand.u32 %v182, 4294901760
    %v844 = vsub.f32 %v182, %v843
    %v845 = vand.u32 %v844, 4294901760
    %846 = vmatmul.mubr.f32.gmra.mrb[0].mxu0 %v845
    %v847 = vpop.f32.mrb[0].mxu0
    %v848 = vadd.f32 %v704, %v847
    %v849 = vpop.f32.mrb[0].mxu0
    %850 = vmatprep.mubr.f32.mxu0 0.0
    %v851 = vand.u32 %v183, 4294901760
    %v852 = vsub.f32 %v183, %v851
    %v853 = vand.u32 %v852, 4294901760
    %854 = vmatmul.mubr.f32.gmra.mrb[0].mxu0 %v853
    %v855 = vpop.f32.mrb[0].mxu0
    %v856 = vadd.f32 %v711, %v855
    %v857 = vpop.f32.mrb[0].mxu0
    %858 = vdwg.mxu0
    %859 = vmatprep.subr.mxu0 0.0
    %v860 = vand.u32 %v184, 4294901760
    %v861 = vsub.f32 %v184, %v860
    %v862 = vand.u32 %v861, 4294901760
    %863 = vmatpush1.msra.mxu0 %v862
    %864 = vmatprep.subr.mxu0 0.0
    %v865 = vand.u32 %v185, 4294901760
    %v866 = vsub.f32 %v185, %v865
    %v867 = vand.u32 %v866, 4294901760
    %868 = vmatpush1.msra.mxu0 %v867
    %869 = vmatprep.subr.mxu0 0.0
    %v870 = vand.u32 %v186, 4294901760
    %v871 = vsub.f32 %v186, %v870
    %v872 = vand.u32 %v871, 4294901760
    %873 = vmatpush1.msra.mxu0 %v872
    %874 = vmatprep.subr.mxu0 0.0
    %v875 = vand.u32 %v187, 4294901760
    %v876 = vsub.f32 %v187, %v875
    %v877 = vand.u32 %v876, 4294901760
    %878 = vmatpush1.msra.mxu0 %v877
    %879 = vmatprep.subr.mxu0 0.0
    %v880 = vand.u32 %v188, 4294901760
    %v881 = vsub.f32 %v188, %v880
    %v882 = vand.u32 %v881, 4294901760
    %883 = vmatpush1.msra.mxu0 %v882
    %884 = vmatprep.subr.mxu0 0.0
    %v885 = vand.u32 %v189, 4294901760
    %v886 = vsub.f32 %v189, %v885
    %v887 = vand.u32 %v886, 4294901760
    %888 = vmatpush1.msra.mxu0 %v887
    %889 = vmatprep.subr.mxu0 0.0
    %v890 = vand.u32 %v190, 4294901760
    %v891 = vsub.f32 %v190, %v890
    %v892 = vand.u32 %v891, 4294901760
    %893 = vmatpush1.msra.mxu0 %v892
    %894 = vmatprep.subr.mxu0 0.0
    %v895 = vand.u32 %v191, 4294901760
    %v896 = vsub.f32 %v191, %v895
    %v897 = vand.u32 %v896, 4294901760
    %898 = vmatpush1.msra.mxu0 %v897
    %899 = vmatprep.subr.mxu0 0.0
    %v900 = vand.u32 %v192, 4294901760
    %v901 = vsub.f32 %v192, %v900
    %v902 = vand.u32 %v901, 4294901760
    %903 = vmatpush1.msra.mxu0 %v902
    %904 = vmatprep.subr.mxu0 0.0
    %v905 = vand.u32 %v193, 4294901760
    %v906 = vsub.f32 %v193, %v905
    %v907 = vand.u32 %v906, 4294901760
    %908 = vmatpush1.msra.mxu0 %v907
    %909 = vmatprep.subr.mxu0 0.0
    %v910 = vand.u32 %v194, 4294901760
    %v911 = vsub.f32 %v194, %v910
    %v912 = vand.u32 %v911, 4294901760
    %913 = vmatpush1.msra.mxu0 %v912
    %914 = vmatprep.subr.mxu0 0.0
    %v915 = vand.u32 %v195, 4294901760
    %v916 = vsub.f32 %v195, %v915
    %v917 = vand.u32 %v916, 4294901760
    %918 = vmatpush1.msra.mxu0 %v917
    %919 = vmatprep.subr.mxu0 0.0
    %v920 = vand.u32 %v196, 4294901760
    %v921 = vsub.f32 %v196, %v920
    %v922 = vand.u32 %v921, 4294901760
    %923 = vmatpush1.msra.mxu0 %v922
    %924 = vmatprep.subr.mxu0 0.0
    %v925 = vand.u32 %v197, 4294901760
    %v926 = vsub.f32 %v197, %v925
    %v927 = vand.u32 %v926, 4294901760
    %928 = vmatpush1.msra.mxu0 %v927
    %929 = vmatprep.subr.mxu0 0.0
    %v930 = vand.u32 %v198, 4294901760
    %v931 = vsub.f32 %v198, %v930
    %v932 = vand.u32 %v931, 4294901760
    %933 = vmatpush1.msra.mxu0 %v932
    %934 = vmatprep.subr.mxu0 0.0
    %v935 = vand.u32 %v199, 4294901760
    %v936 = vsub.f32 %v199, %v935
    %v937 = vand.u32 %v936, 4294901760
    %938 = vmatpush1.msra.mxu0 %v937
    %939 = vmatprep.subr.mxu0 0.0
    %940 = vmatpush1.msra.mxu0 0.0
    %941 = vmatprep.subr.mxu0 0.0
    %942 = vmatpush1.msra.mxu0 0.0
    %943 = vmatprep.subr.mxu0 0.0
    %944 = vmatpush1.msra.mxu0 0.0
    %945 = vmatprep.subr.mxu0 0.0
    %946 = vmatpush1.msra.mxu0 0.0
    %947 = vmatprep.subr.mxu0 0.0
    %948 = vmatpush1.msra.mxu0 0.0
    %949 = vmatprep.subr.mxu0 0.0
    %950 = vmatpush1.msra.mxu0 0.0
    %951 = vmatprep.subr.mxu0 0.0
    %952 = vmatpush1.msra.mxu0 0.0
    %953 = vmatprep.subr.mxu0 0.0
    %954 = vmatpush1.msra.mxu0 0.0
    %955 = vmatprep.subr.mxu0 0.0
    %956 = vmatpush1.msra.mxu0 0.0
    %957 = vmatprep.subr.mxu0 0.0
    %958 = vmatpush1.msra.mxu0 0.0
    %959 = vmatprep.subr.mxu0 0.0
    %960 = vmatpush1.msra.mxu0 0.0
    %961 = vmatprep.subr.mxu0 0.0
    %962 = vmatpush1.msra.mxu0 0.0
    %963 = vmatprep.subr.mxu0 0.0
    %964 = vmatpush1.msra.mxu0 0.0
    %965 = vmatprep.subr.mxu0 0.0
    %966 = vmatpush1.msra.mxu0 0.0
    %967 = vmatprep.subr.mxu0 0.0
    %968 = vmatpush1.msra.mxu0 0.0
    %969 = vmatprep.subr.mxu0 0.0
    %970 = vmatpush1.msra.mxu0 0.0
    %971 = vmatprep.mubr.f32.mxu0 0.0
    %v972 = vand.u32 %v176, 4294901760
    %973 = vmatmul.mubr.f32.gmra.mrb[0].mxu0 %v972
    %v974 = vpop.f32.mrb[0].mxu0
    %v975 = vadd.f32 %v800, %v974
    %v976 = vpop.f32.mrb[0].mxu0
    %977 = vmatprep.mubr.f32.mxu0 0.0
    %v978 = vand.u32 %v177, 4294901760
    %979 = vmatmul.mubr.f32.gmra.mrb[0].mxu0 %v978
    %v980 = vpop.f32.mrb[0].mxu0
    %v981 = vadd.f32 %v808, %v980
    %v982 = vpop.f32.mrb[0].mxu0
    %983 = vmatprep.mubr.f32.mxu0 0.0
    %v984 = vand.u32 %v178, 4294901760
    %985 = vmatmul.mubr.f32.gmra.mrb[0].mxu0 %v984
    %v986 = vpop.f32.mrb[0].mxu0
    %v987 = vadd.f32 %v816, %v986
    %v988 = vpop.f32.mrb[0].mxu0
    %989 = vmatprep.mubr.f32.mxu0 0.0
    %v990 = vand.u32 %v179, 4294901760
    %991 = vmatmul.mubr.f32.gmra.mrb[0].mxu0 %v990
    %v992 = vpop.f32.mrb[0].mxu0
    %v993 = vadd.f32 %v824, %v992
    %v994 = vpop.f32.mrb[0].mxu0
    %995 = vmatprep.mubr.f32.mxu0 0.0
    %v996 = vand.u32 %v180, 4294901760
    %997 = vmatmul.mubr.f32.gmra.mrb[0].mxu0 %v996
    %v998 = vpop.f32.mrb[0].mxu0
    %v999 = vadd.f32 %v832, %v998
    %v1000 = vpop.f32.mrb[0].mxu0
    %1001 = vmatprep.mubr.f32.mxu0 0.0
    %v1002 = vand.u32 %v181, 4294901760
    %1003 = vmatmul.mubr.f32.gmra.mrb[0].mxu0 %v1002
    %v1004 = vpop.f32.mrb[0].mxu0
    %v1005 = vadd.f32 %v840, %v1004
    %v1006 = vpop.f32.mrb[0].mxu0
    %1007 = vmatprep.mubr.f32.mxu0 0.0
    %v1008 = vand.u32 %v182, 4294901760
    %1009 = vmatmul.mubr.f32.gmra.mrb[0].mxu0 %v1008
    %v1010 = vpop.f32.mrb[0].mxu0
    %v1011 = vadd.f32 %v848, %v1010
    %v1012 = vpop.f32.mrb[0].mxu0
    %1013 = vmatprep.mubr.f32.mxu0 0.0
    %v1014 = vand.u32 %v183, 4294901760
    %1015 = vmatmul.mubr.f32.gmra.mrb[0].mxu0 %v1014
    %v1016 = vpop.f32.mrb[0].mxu0
    %v1017 = vadd.f32 %v856, %v1016
    %v1018 = vpop.f32.mrb[0].mxu0
    %1019 = vdwg.mxu0
    %1020 = vmatprep.subr.mxu0 0.0
    %v1021 = vand.u32 %v184, 4294901760
    %1022 = vmatpush1.msra.mxu0 %v1021
    %1023 = vmatprep.subr.mxu0 0.0
    %v1024 = vand.u32 %v185, 4294901760
    %1025 = vmatpush1.msra.mxu0 %v1024
    %1026 = vmatprep.subr.mxu0 0.0
    %v1027 = vand.u32 %v186, 4294901760
    %1028 = vmatpush1.msra.mxu0 %v1027
    %1029 = vmatprep.subr.mxu0 0.0
    %v1030 = vand.u32 %v187, 4294901760
    %1031 = vmatpush1.msra.mxu0 %v1030
    %1032 = vmatprep.subr.mxu0 0.0
    %v1033 = vand.u32 %v188, 4294901760
    %1034 = vmatpush1.msra.mxu0 %v1033
    %1035 = vmatprep.subr.mxu0 0.0
    %v1036 = vand.u32 %v189, 4294901760
    %1037 = vmatpush1.msra.mxu0 %v1036
    %1038 = vmatprep.subr.mxu0 0.0
    %v1039 = vand.u32 %v190, 4294901760
    %1040 = vmatpush1.msra.mxu0 %v1039
    %1041 = vmatprep.subr.mxu0 0.0
    %v1042 = vand.u32 %v191, 4294901760
    %1043 = vmatpush1.msra.mxu0 %v1042
    %1044 = vmatprep.subr.mxu0 0.0
    %v1045 = vand.u32 %v192, 4294901760
    %1046 = vmatpush1.msra.mxu0 %v1045
    %1047 = vmatprep.subr.mxu0 0.0
    %v1048 = vand.u32 %v193, 4294901760
    %1049 = vmatpush1.msra.mxu0 %v1048
    %1050 = vmatprep.subr.mxu0 0.0
    %v1051 = vand.u32 %v194, 4294901760
    %1052 = vmatpush1.msra.mxu0 %v1051
    %1053 = vmatprep.subr.mxu0 0.0
    %v1054 = vand.u32 %v195, 4294901760
    %1055 = vmatpush1.msra.mxu0 %v1054
    %1056 = vmatprep.subr.mxu0 0.0
    %v1057 = vand.u32 %v196, 4294901760
    %1058 = vmatpush1.msra.mxu0 %v1057
    %1059 = vmatprep.subr.mxu0 0.0
    %v1060 = vand.u32 %v197, 4294901760
    %1061 = vmatpush1.msra.mxu0 %v1060
    %1062 = vmatprep.subr.mxu0 0.0
    %v1063 = vand.u32 %v198, 4294901760
    %1064 = vmatpush1.msra.mxu0 %v1063
    %1065 = vmatprep.subr.mxu0 0.0
    %v1066 = vand.u32 %v199, 4294901760
    %1067 = vmatpush1.msra.mxu0 %v1066
    %1068 = vmatprep.subr.mxu0 0.0
    %1069 = vmatpush1.msra.mxu0 0.0
    %1070 = vmatprep.subr.mxu0 0.0
    %1071 = vmatpush1.msra.mxu0 0.0
    %1072 = vmatprep.subr.mxu0 0.0
    %1073 = vmatpush1.msra.mxu0 0.0
    %1074 = vmatprep.subr.mxu0 0.0
    %1075 = vmatpush1.msra.mxu0 0.0
    %1076 = vmatprep.subr.mxu0 0.0
    %1077 = vmatpush1.msra.mxu0 0.0
    %1078 = vmatprep.subr.mxu0 0.0
    %1079 = vmatpush1.msra.mxu0 0.0
    %1080 = vmatprep.subr.mxu0 0.0
    %1081 = vmatpush1.msra.mxu0 0.0
    %1082 = vmatprep.subr.mxu0 0.0
    %1083 = vmatpush1.msra.mxu0 0.0
    %1084 = vmatprep.subr.mxu0 0.0
    %1085 = vmatpush1.msra.mxu0 0.0
    %1086 = vmatprep.subr.mxu0 0.0
    %1087 = vmatpush1.msra.mxu0 0.0
    %1088 = vmatprep.subr.mxu0 0.0
    %1089 = vmatpush1.msra.mxu0 0.0
    %1090 = vmatprep.subr.mxu0 0.0
    %1091 = vmatpush1.msra.mxu0 0.0
    %1092 = vmatprep.subr.mxu0 0.0
    %1093 = vmatpush1.msra.mxu0 0.0
    %1094 = vmatprep.subr.mxu0 0.0
    %1095 = vmatpush1.msra.mxu0 0.0
    %1096 = vmatprep.subr.mxu0 0.0
    %1097 = vmatpush1.msra.mxu0 0.0
    %1098 = vmatprep.subr.mxu0 0.0
    %1099 = vmatpush1.msra.mxu0 0.0
    %1100 = vmatprep.mubr.f32.mxu0 0.0
    %v1101 = vand.u32 %v176, 4294901760
    %1102 = vmatmul.mubr.f32.gmra.mrb[0].mxu0 %v1101
    %v1103 = vpop.f32.mrb[0].mxu0
    %v1104 = vadd.f32 %v975, %v1103
    %v1105 = vpop.f32.mrb[0].mxu0
    %1106 = vmatprep.mubr.f32.mxu0 0.0
    %v1107 = vand.u32 %v177, 4294901760
    %1108 = vmatmul.mubr.f32.gmra.mrb[0].mxu0 %v1107
    %v1109 = vpop.f32.mrb[0].mxu0
    %v1110 = vadd.f32 %v981, %v1109
    %v1111 = vpop.f32.mrb[0].mxu0
    %1112 = vmatprep.mubr.f32.mxu0 0.0
    %v1113 = vand.u32 %v178, 4294901760
    %1114 = vmatmul.mubr.f32.gmra.mrb[0].mxu0 %v1113
    %v1115 = vpop.f32.mrb[0].mxu0
    %v1116 = vadd.f32 %v987, %v1115
    %v1117 = vpop.f32.mrb[0].mxu0
    %1118 = vmatprep.mubr.f32.mxu0 0.0
    %v1119 = vand.u32 %v179, 4294901760
    %1120 = vmatmul.mubr.f32.gmra.mrb[0].mxu0 %v1119
    %v1121 = vpop.f32.mrb[0].mxu0
    %v1122 = vadd.f32 %v993, %v1121
    %v1123 = vpop.f32.mrb[0].mxu0
    %1124 = vmatprep.mubr.f32.mxu0 0.0
    %v1125 = vand.u32 %v180, 4294901760
    %1126 = vmatmul.mubr.f32.gmra.mrb[0].mxu0 %v1125
    %v1127 = vpop.f32.mrb[0].mxu0
    %v1128 = vadd.f32 %v999, %v1127
    %v1129 = vpop.f32.mrb[0].mxu0
    %1130 = vmatprep.mubr.f32.mxu0 0.0
    %v1131 = vand.u32 %v181, 4294901760
    %1132 = vmatmul.mubr.f32.gmra.mrb[0].mxu0 %v1131
    %v1133 = vpop.f32.mrb[0].mxu0
    %v1134 = vadd.f32 %v1005, %v1133
    %v1135 = vpop.f32.mrb[0].mxu0
    %1136 = vmatprep.mubr.f32.mxu0 0.0
    %v1137 = vand.u32 %v182, 4294901760
    %1138 = vmatmul.mubr.f32.gmra.mrb[0].mxu0 %v1137
    %v1139 = vpop.f32.mrb[0].mxu0
    %v1140 = vadd.f32 %v1011, %v1139
    %v1141 = vpop.f32.mrb[0].mxu0
    %1142 = vmatprep.mubr.f32.mxu0 0.0
    %v1143 = vand.u32 %v183, 4294901760
    %1144 = vmatmul.mubr.f32.gmra.mrb[0].mxu0 %v1143
    %v1145 = vpop.f32.mrb[0].mxu0
    %v1146 = vadd.f32 %v1017, %v1145
    %v1147 = vpop.f32.mrb[0].mxu0
    %1148 = vdwg.mxu0
    %vm1149 = vcmp.gt.f32.partialorder %v1104, 0.0
    %vm1150 = vcmp.gt.f32.partialorder %v1110, 0.0
    %vm1151 = vcmp.gt.f32.partialorder %v1116, 0.0
    %vm1152 = vcmp.gt.f32.partialorder %v1122, 0.0
    %vm1153 = vcmp.gt.f32.partialorder %v1128, 0.0
    %vm1154 = vcmp.gt.f32.partialorder %v1134, 0.0
    %vm1155 = vcmp.gt.f32.partialorder %v1140, 0.0
    %vm1156 = vcmp.gt.f32.partialorder %v1146, 0.0
    %v1157 = vmul.f32 %v1104, 1.442695
    %v1158 = vpow.pop %v1157
    %v1159 = vmul.f32 %v1110, 1.442695
    %v1160 = vpow.pop %v1159
    %v1161 = vmul.f32 %v1116, 1.442695
    %v1162 = vpow.pop %v1161
    %v1163 = vmul.f32 %v1122, 1.442695
    %v1164 = vpow.pop %v1163
    %v1165 = vmul.f32 %v1128, 1.442695
    %v1166 = vpow.pop %v1165
    %v1167 = vmul.f32 %v1134, 1.442695
    %v1168 = vpow.pop %v1167
    %v1169 = vmul.f32 %v1140, 1.442695
    %v1170 = vpow.pop %v1169
    %v1171 = vmul.f32 %v1146, 1.442695
    %v1172 = vpow.pop %v1171
    %v1173 = vsub.f32 %v1158, 1.0
    %v1174 = vsub.f32 %v1160, 1.0
    %v1175 = vsub.f32 %v1162, 1.0
    %v1176 = vsub.f32 %v1164, 1.0
    %v1177 = vsub.f32 %v1166, 1.0
    %v1178 = vsub.f32 %v1168, 1.0
    %v1179 = vsub.f32 %v1170, 1.0
    %v1180 = vsub.f32 %v1172, 1.0
    %v1181 = vsel %vm1149, %v1104, %v1173
    %v1182 = vsel %vm1150, %v1110, %v1174
    %v1183 = vsel %vm1151, %v1116, %v1175
    %v1184 = vsel %vm1152, %v1122, %v1176
    %v1185 = vsel %vm1153, %v1128, %v1177
    %v1186 = vsel %vm1154, %v1134, %v1178
    %v1187 = vsel %vm1155, %v1140, %v1179
    %v1188 = vsel %vm1156, %v1146, %v1180
    %v1189 = vld [vmem:[#allocation7] sm:$0xff]
    %v1190 = vld [vmem:[#allocation7 + $0x8] sm:$0xff]
    %v1191 = vld [vmem:[#allocation7 + $0x10] sm:$0xff]
    %v1192 = vld [vmem:[#allocation7 + $0x18] sm:$0xff]
    %v1193 = vld [vmem:[#allocation7 + $0x20] sm:$0xff]
    %v1194 = vld [vmem:[#allocation7 + $0x28] sm:$0xff]
    %v1195 = vld [vmem:[#allocation7 + $0x30] sm:$0xff]
    %v1196 = vld [vmem:[#allocation7 + $0x38] sm:$0xff]
    %v1197 = vld [vmem:[#allocation7 + $0x40] sm:$0xff]
    %v1198 = vld [vmem:[#allocation7 + $0x48] sm:$0xff]
    %v1199 = vld [vmem:[#allocation7 + $0x50] sm:$0xff]
    %v1200 = vld [vmem:[#allocation7 + $0x58] sm:$0xff]
    %v1201 = vld [vmem:[#allocation7 + $0x60] sm:$0xff]
    %v1202 = vld [vmem:[#allocation7 + $0x68] sm:$0xff]
    %v1203 = vld [vmem:[#allocation7 + $0x70] sm:$0xff]
    %v1204 = vld [vmem:[#allocation7 + $0x78] sm:$0xff]
    %v1205 = vld [vmem:[%s6] sm:$0x1]
    %v1207 = vlaneseq
    %v1208 = vshrl.u32 %v1207, 7
    %v1209 = vsub.s32 0, %v1208
    %v1210 = vrot.slane %v1205, %v1209
    %1212 = vmatprep.subr.mxu0 0.0
    %v1213 = vand.u32 %v1189, 4294901760
    %1214 = vmatpush1.msra.mxu0 %v1213
    %1215 = vmatprep.subr.mxu0 0.0
    %v1216 = vand.u32 %v1190, 4294901760
    %1217 = vmatpush1.msra.mxu0 %v1216
    %1218 = vmatprep.subr.mxu0 0.0
    %v1219 = vand.u32 %v1191, 4294901760
    %1220 = vmatpush1.msra.mxu0 %v1219
    %1221 = vmatprep.subr.mxu0 0.0
    %v1222 = vand.u32 %v1192, 4294901760
    %1223 = vmatpush1.msra.mxu0 %v1222
    %1224 = vmatprep.subr.mxu0 0.0
    %v1225 = vand.u32 %v1193, 4294901760
    %1226 = vmatpush1.msra.mxu0 %v1225
    %1227 = vmatprep.subr.mxu0 0.0
    %v1228 = vand.u32 %v1194, 4294901760
    %1229 = vmatpush1.msra.mxu0 %v1228
    %1230 = vmatprep.subr.mxu0 0.0
    %v1231 = vand.u32 %v1195, 4294901760
    %1232 = vmatpush1.msra.mxu0 %v1231
    %1233 = vmatprep.subr.mxu0 0.0
    %v1234 = vand.u32 %v1196, 4294901760
    %1235 = vmatpush1.msra.mxu0 %v1234
    %1236 = vmatprep.subr.mxu0 0.0
    %v1237 = vand.u32 %v1197, 4294901760
    %1238 = vmatpush1.msra.mxu0 %v1237
    %1239 = vmatprep.subr.mxu0 0.0
    %v1240 = vand.u32 %v1198, 4294901760
    %1241 = vmatpush1.msra.mxu0 %v1240
    %1242 = vmatprep.subr.mxu0 0.0
    %v1243 = vand.u32 %v1199, 4294901760
    %1244 = vmatpush1.msra.mxu0 %v1243
    %1245 = vmatprep.subr.mxu0 0.0
    %v1246 = vand.u32 %v1200, 4294901760
    %1247 = vmatpush1.msra.mxu0 %v1246
    %1248 = vmatprep.subr.mxu0 0.0
    %v1249 = vand.u32 %v1201, 4294901760
    %1250 = vmatpush1.msra.mxu0 %v1249
    %1251 = vmatprep.subr.mxu0 0.0
    %v1252 = vand.u32 %v1202, 4294901760
    %1253 = vmatpush1.msra.mxu0 %v1252
    %1254 = vmatprep.subr.mxu0 0.0
    %v1255 = vand.u32 %v1203, 4294901760
    %1256 = vmatpush1.msra.mxu0 %v1255
    %1257 = vmatprep.subr.mxu0 0.0
    %v1258 = vand.u32 %v1204, 4294901760
    %1259 = vmatpush1.msra.mxu0 %v1258
    %1260 = vmatprep.subr.mxu0 0.0
    %1261 = vmatpush1.msra.mxu0 0.0
    %1262 = vmatprep.subr.mxu0 0.0
    %1263 = vmatpush1.msra.mxu0 0.0
    %1264 = vmatprep.subr.mxu0 0.0
    %1265 = vmatpush1.msra.mxu0 0.0
    %1266 = vmatprep.subr.mxu0 0.0
    %1267 = vmatpush1.msra.mxu0 0.0
    %1268 = vmatprep.subr.mxu0 0.0
    %1269 = vmatpush1.msra.mxu0 0.0
    %1270 = vmatprep.subr.mxu0 0.0
    %1271 = vmatpush1.msra.mxu0 0.0
    %1272 = vmatprep.subr.mxu0 0.0
    %1273 = vmatpush1.msra.mxu0 0.0
    %1274 = vmatprep.subr.mxu0 0.0
    %1275 = vmatpush1.msra.mxu0 0.0
    %1276 = vmatprep.subr.mxu0 0.0
    %1277 = vmatpush1.msra.mxu0 0.0
    %1278 = vmatprep.subr.mxu0 0.0
    %1279 = vmatpush1.msra.mxu0 0.0
    %1280 = vmatprep.subr.mxu0 0.0
    %1281 = vmatpush1.msra.mxu0 0.0
    %1282 = vmatprep.subr.mxu0 0.0
    %1283 = vmatpush1.msra.mxu0 0.0
    %1284 = vmatprep.subr.mxu0 0.0
    %1285 = vmatpush1.msra.mxu0 0.0
    %1286 = vmatprep.subr.mxu0 0.0
    %1287 = vmatpush1.msra.mxu0 0.0
    %1288 = vmatprep.subr.mxu0 0.0
    %1289 = vmatpush1.msra.mxu0 0.0
    %1290 = vmatprep.subr.mxu0 0.0
    %1291 = vmatpush1.msra.mxu0 0.0
    %1292 = vmatprep.mubr.f32.mxu0 0.0
    %v1293 = vand.u32 %v1181, 4294901760
    %v1294 = vsub.f32 %v1181, %v1293
    %v1295 = vand.u32 %v1294, 4294901760
    %v1296 = vsub.f32 %v1294, %v1295
    %v1297 = vand.u32 %v1296, 4294901760
    %1298 = vmatmul.mubr.f32.gmra.mrb[0].mxu0 %v1297
    %v1299 = vpop.f32.mrb[0].mxu0
    %v1300 = vadd.f32 %v1210, %v1299
    %v1301 = vpop.f32.mrb[0].mxu0
    %1302 = vmatprep.mubr.f32.mxu0 0.0
    %v1303 = vand.u32 %v1182, 4294901760
    %v1304 = vsub.f32 %v1182, %v1303
    %v1305 = vand.u32 %v1304, 4294901760
    %v1306 = vsub.f32 %v1304, %v1305
    %v1307 = vand.u32 %v1306, 4294901760
    %1308 = vmatmul.mubr.f32.gmra.mrb[0].mxu0 %v1307
    %v1309 = vpop.f32.mrb[0].mxu0
    %v1310 = vadd.f32 %v1210, %v1309
    %v1311 = vpop.f32.mrb[0].mxu0
    %1312 = vmatprep.mubr.f32.mxu0 0.0
    %v1313 = vand.u32 %v1183, 4294901760
    %v1314 = vsub.f32 %v1183, %v1313
    %v1315 = vand.u32 %v1314, 4294901760
    %v1316 = vsub.f32 %v1314, %v1315
    %v1317 = vand.u32 %v1316, 4294901760
    %1318 = vmatmul.mubr.f32.gmra.mrb[0].mxu0 %v1317
    %v1319 = vpop.f32.mrb[0].mxu0
    %v1320 = vadd.f32 %v1210, %v1319
    %v1321 = vpop.f32.mrb[0].mxu0
    %1322 = vmatprep.mubr.f32.mxu0 0.0
    %v1323 = vand.u32 %v1184, 4294901760
    %v1324 = vsub.f32 %v1184, %v1323
    %v1325 = vand.u32 %v1324, 4294901760
    %v1326 = vsub.f32 %v1324, %v1325
    %v1327 = vand.u32 %v1326, 4294901760
    %1328 = vmatmul.mubr.f32.gmra.mrb[0].mxu0 %v1327
    %v1329 = vpop.f32.mrb[0].mxu0
    %v1330 = vadd.f32 %v1210, %v1329
    %v1331 = vpop.f32.mrb[0].mxu0
    %1332 = vmatprep.mubr.f32.mxu0 0.0
    %v1333 = vand.u32 %v1185, 4294901760
    %v1334 = vsub.f32 %v1185, %v1333
    %v1335 = vand.u32 %v1334, 4294901760
    %v1336 = vsub.f32 %v1334, %v1335
    %v1337 = vand.u32 %v1336, 4294901760
    %1338 = vmatmul.mubr.f32.gmra.mrb[0].mxu0 %v1337
    %v1339 = vpop.f32.mrb[0].mxu0
    %v1340 = vadd.f32 %v1210, %v1339
    %v1341 = vpop.f32.mrb[0].mxu0
    %1342 = vmatprep.mubr.f32.mxu0 0.0
    %v1343 = vand.u32 %v1186, 4294901760
    %v1344 = vsub.f32 %v1186, %v1343
    %v1345 = vand.u32 %v1344, 4294901760
    %v1346 = vsub.f32 %v1344, %v1345
    %v1347 = vand.u32 %v1346, 4294901760
    %1348 = vmatmul.mubr.f32.gmra.mrb[0].mxu0 %v1347
    %v1349 = vpop.f32.mrb[0].mxu0
    %v1350 = vadd.f32 %v1210, %v1349
    %v1351 = vpop.f32.mrb[0].mxu0
    %1352 = vmatprep.mubr.f32.mxu0 0.0
    %v1353 = vand.u32 %v1187, 4294901760
    %v1354 = vsub.f32 %v1187, %v1353
    %v1355 = vand.u32 %v1354, 4294901760
    %v1356 = vsub.f32 %v1354, %v1355
    %v1357 = vand.u32 %v1356, 4294901760
    %1358 = vmatmul.mubr.f32.gmra.mrb[0].mxu0 %v1357
    %v1359 = vpop.f32.mrb[0].mxu0
    %v1360 = vadd.f32 %v1210, %v1359
    %v1361 = vpop.f32.mrb[0].mxu0
    %1362 = vmatprep.mubr.f32.mxu0 0.0
    %v1363 = vand.u32 %v1188, 4294901760
    %v1364 = vsub.f32 %v1188, %v1363
    %v1365 = vand.u32 %v1364, 4294901760
    %v1366 = vsub.f32 %v1364, %v1365
    %v1367 = vand.u32 %v1366, 4294901760
    %1368 = vmatmul.mubr.f32.gmra.mrb[0].mxu0 %v1367
    %v1369 = vpop.f32.mrb[0].mxu0
    %v1370 = vadd.f32 %v1210, %v1369
    %v1371 = vpop.f32.mrb[0].mxu0
    %1372 = vdwg.mxu0
    %1373 = vmatprep.subr.mxu0 0.0
    %v1374 = vand.u32 %v1189, 4294901760
    %v1375 = vsub.f32 %v1189, %v1374
    %v1376 = vand.u32 %v1375, 4294901760
    %v1377 = vsub.f32 %v1375, %v1376
    %v1378 = vand.u32 %v1377, 4294901760
    %1379 = vmatpush1.msra.mxu0 %v1378
    %1380 = vmatprep.subr.mxu0 0.0
    %v1381 = vand.u32 %v1190, 4294901760
    %v1382 = vsub.f32 %v1190, %v1381
    %v1383 = vand.u32 %v1382, 4294901760
    %v1384 = vsub.f32 %v1382, %v1383
    %v1385 = vand.u32 %v1384, 4294901760
    %1386 = vmatpush1.msra.mxu0 %v1385
    %1387 = vmatprep.subr.mxu0 0.0
    %v1388 = vand.u32 %v1191, 4294901760
    %v1389 = vsub.f32 %v1191, %v1388
    %v1390 = vand.u32 %v1389, 4294901760
    %v1391 = vsub.f32 %v1389, %v1390
    %v1392 = vand.u32 %v1391, 4294901760
    %1393 = vmatpush1.msra.mxu0 %v1392
    %1394 = vmatprep.subr.mxu0 0.0
    %v1395 = vand.u32 %v1192, 4294901760
    %v1396 = vsub.f32 %v1192, %v1395
    %v1397 = vand.u32 %v1396, 4294901760
    %v1398 = vsub.f32 %v1396, %v1397
    %v1399 = vand.u32 %v1398, 4294901760
    %1400 = vmatpush1.msra.mxu0 %v1399
    %1401 = vmatprep.subr.mxu0 0.0
    %v1402 = vand.u32 %v1193, 4294901760
    %v1403 = vsub.f32 %v1193, %v1402
    %v1404 = vand.u32 %v1403, 4294901760
    %v1405 = vsub.f32 %v1403, %v1404
    %v1406 = vand.u32 %v1405, 4294901760
    %1407 = vmatpush1.msra.mxu0 %v1406
    %1408 = vmatprep.subr.mxu0 0.0
    %v1409 = vand.u32 %v1194, 4294901760
    %v1410 = vsub.f32 %v1194, %v1409
    %v1411 = vand.u32 %v1410, 4294901760
    %v1412 = vsub.f32 %v1410, %v1411
    %v1413 = vand.u32 %v1412, 4294901760
    %1414 = vmatpush1.msra.mxu0 %v1413
    %1415 = vmatprep.subr.mxu0 0.0
    %v1416 = vand.u32 %v1195, 4294901760
    %v1417 = vsub.f32 %v1195, %v1416
    %v1418 = vand.u32 %v1417, 4294901760
    %v1419 = vsub.f32 %v1417, %v1418
    %v1420 = vand.u32 %v1419, 4294901760
    %1421 = vmatpush1.msra.mxu0 %v1420
    %1422 = vmatprep.subr.mxu0 0.0
    %v1423 = vand.u32 %v1196, 4294901760
    %v1424 = vsub.f32 %v1196, %v1423
    %v1425 = vand.u32 %v1424, 4294901760
    %v1426 = vsub.f32 %v1424, %v1425
    %v1427 = vand.u32 %v1426, 4294901760
    %1428 = vmatpush1.msra.mxu0 %v1427
    %1429 = vmatprep.subr.mxu0 0.0
    %v1430 = vand.u32 %v1197, 4294901760
    %v1431 = vsub.f32 %v1197, %v1430
    %v1432 = vand.u32 %v1431, 4294901760
    %v1433 = vsub.f32 %v1431, %v1432
    %v1434 = vand.u32 %v1433, 4294901760
    %1435 = vmatpush1.msra.mxu0 %v1434
    %1436 = vmatprep.subr.mxu0 0.0
    %v1437 = vand.u32 %v1198, 4294901760
    %v1438 = vsub.f32 %v1198, %v1437
    %v1439 = vand.u32 %v1438, 4294901760
    %v1440 = vsub.f32 %v1438, %v1439
    %v1441 = vand.u32 %v1440, 4294901760
    %1442 = vmatpush1.msra.mxu0 %v1441
    %1443 = vmatprep.subr.mxu0 0.0
    %v1444 = vand.u32 %v1199, 4294901760
    %v1445 = vsub.f32 %v1199, %v1444
    %v1446 = vand.u32 %v1445, 4294901760
    %v1447 = vsub.f32 %v1445, %v1446
    %v1448 = vand.u32 %v1447, 4294901760
    %1449 = vmatpush1.msra.mxu0 %v1448
    %1450 = vmatprep.subr.mxu0 0.0
    %v1451 = vand.u32 %v1200, 4294901760
    %v1452 = vsub.f32 %v1200, %v1451
    %v1453 = vand.u32 %v1452, 4294901760
    %v1454 = vsub.f32 %v1452, %v1453
    %v1455 = vand.u32 %v1454, 4294901760
    %1456 = vmatpush1.msra.mxu0 %v1455
    %1457 = vmatprep.subr.mxu0 0.0
    %v1458 = vand.u32 %v1201, 4294901760
    %v1459 = vsub.f32 %v1201, %v1458
    %v1460 = vand.u32 %v1459, 4294901760
    %v1461 = vsub.f32 %v1459, %v1460
    %v1462 = vand.u32 %v1461, 4294901760
    %1463 = vmatpush1.msra.mxu0 %v1462
    %1464 = vmatprep.subr.mxu0 0.0
    %v1465 = vand.u32 %v1202, 4294901760
    %v1466 = vsub.f32 %v1202, %v1465
    %v1467 = vand.u32 %v1466, 4294901760
    %v1468 = vsub.f32 %v1466, %v1467
    %v1469 = vand.u32 %v1468, 4294901760
    %1470 = vmatpush1.msra.mxu0 %v1469
    %1471 = vmatprep.subr.mxu0 0.0
    %v1472 = vand.u32 %v1203, 4294901760
    %v1473 = vsub.f32 %v1203, %v1472
    %v1474 = vand.u32 %v1473, 4294901760
    %v1475 = vsub.f32 %v1473, %v1474
    %v1476 = vand.u32 %v1475, 4294901760
    %1477 = vmatpush1.msra.mxu0 %v1476
    %1478 = vmatprep.subr.mxu0 0.0
    %v1479 = vand.u32 %v1204, 4294901760
    %v1480 = vsub.f32 %v1204, %v1479
    %v1481 = vand.u32 %v1480, 4294901760
    %v1482 = vsub.f32 %v1480, %v1481
    %v1483 = vand.u32 %v1482, 4294901760
    %1484 = vmatpush1.msra.mxu0 %v1483
    %1485 = vmatprep.subr.mxu0 0.0
    %1486 = vmatpush1.msra.mxu0 0.0
    %1487 = vmatprep.subr.mxu0 0.0
    %1488 = vmatpush1.msra.mxu0 0.0
    %1489 = vmatprep.subr.mxu0 0.0
    %1490 = vmatpush1.msra.mxu0 0.0
    %1491 = vmatprep.subr.mxu0 0.0
    %1492 = vmatpush1.msra.mxu0 0.0
    %1493 = vmatprep.subr.mxu0 0.0
    %1494 = vmatpush1.msra.mxu0 0.0
    %1495 = vmatprep.subr.mxu0 0.0
    %1496 = vmatpush1.msra.mxu0 0.0
    %1497 = vmatprep.subr.mxu0 0.0
    %1498 = vmatpush1.msra.mxu0 0.0
    %1499 = vmatprep.subr.mxu0 0.0
    %1500 = vmatpush1.msra.mxu0 0.0
    %1501 = vmatprep.subr.mxu0 0.0
    %1502 = vmatpush1.msra.mxu0 0.0
    %1503 = vmatprep.subr.mxu0 0.0
    %1504 = vmatpush1.msra.mxu0 0.0
    %1505 = vmatprep.subr.mxu0 0.0
    %1506 = vmatpush1.msra.mxu0 0.0
    %1507 = vmatprep.subr.mxu0 0.0
    %1508 = vmatpush1.msra.mxu0 0.0
    %1509 = vmatprep.subr.mxu0 0.0
    %1510 = vmatpush1.msra.mxu0 0.0
    %1511 = vmatprep.subr.mxu0 0.0
    %1512 = vmatpush1.msra.mxu0 0.0
    %1513 = vmatprep.subr.mxu0 0.0
    %1514 = vmatpush1.msra.mxu0 0.0
    %1515 = vmatprep.subr.mxu0 0.0
    %1516 = vmatpush1.msra.mxu0 0.0
    %1517 = vmatprep.mubr.f32.mxu0 0.0
    %v1518 = vand.u32 %v1181, 4294901760
    %1519 = vmatmul.mubr.f32.gmra.mrb[0].mxu0 %v1518
    %v1520 = vpop.f32.mrb[0].mxu0
    %v1521 = vadd.f32 %v1300, %v1520
    %v1522 = vpop.f32.mrb[0].mxu0
    %1523 = vmatprep.mubr.f32.mxu0 0.0
    %v1524 = vand.u32 %v1182, 4294901760
    %1525 = vmatmul.mubr.f32.gmra.mrb[0].mxu0 %v1524
    %v1526 = vpop.f32.mrb[0].mxu0
    %v1527 = vadd.f32 %v1310, %v1526
    %v1528 = vpop.f32.mrb[0].mxu0
    %1529 = vmatprep.mubr.f32.mxu0 0.0
    %v1530 = vand.u32 %v1183, 4294901760
    %1531 = vmatmul.mubr.f32.gmra.mrb[0].mxu0 %v1530
    %v1532 = vpop.f32.mrb[0].mxu0
    %v1533 = vadd.f32 %v1320, %v1532
    %v1534 = vpop.f32.mrb[0].mxu0
    %1535 = vmatprep.mubr.f32.mxu0 0.0
    %v1536 = vand.u32 %v1184, 4294901760
    %1537 = vmatmul.mubr.f32.gmra.mrb[0].mxu0 %v1536
    %v1538 = vpop.f32.mrb[0].mxu0
    %v1539 = vadd.f32 %v1330, %v1538
    %v1540 = vpop.f32.mrb[0].mxu0
    %1541 = vmatprep.mubr.f32.mxu0 0.0
    %v1542 = vand.u32 %v1185, 4294901760
    %1543 = vmatmul.mubr.f32.gmra.mrb[0].mxu0 %v1542
    %v1544 = vpop.f32.mrb[0].mxu0
    %v1545 = vadd.f32 %v1340, %v1544
    %v1546 = vpop.f32.mrb[0].mxu0
    %1547 = vmatprep.mubr.f32.mxu0 0.0
    %v1548 = vand.u32 %v1186, 4294901760
    %1549 = vmatmul.mubr.f32.gmra.mrb[0].mxu0 %v1548
    %v1550 = vpop.f32.mrb[0].mxu0
    %v1551 = vadd.f32 %v1350, %v1550
    %v1552 = vpop.f32.mrb[0].mxu0
    %1553 = vmatprep.mubr.f32.mxu0 0.0
    %v1554 = vand.u32 %v1187, 4294901760
    %1555 = vmatmul.mubr.f32.gmra.mrb[0].mxu0 %v1554
    %v1556 = vpop.f32.mrb[0].mxu0
    %v1557 = vadd.f32 %v1360, %v1556
    %v1558 = vpop.f32.mrb[0].mxu0
    %1559 = vmatprep.mubr.f32.mxu0 0.0
    %v1560 = vand.u32 %v1188, 4294901760
    %1561 = vmatmul.mubr.f32.gmra.mrb[0].mxu0 %v1560
    %v1562 = vpop.f32.mrb[0].mxu0
    %v1563 = vadd.f32 %v1370, %v1562
    %v1564 = vpop.f32.mrb[0].mxu0
    %1565 = vdwg.mxu0
    %1566 = vmatprep.subr.mxu0 0.0
    %v1567 = vand.u32 %v1189, 4294901760
    %v1568 = vsub.f32 %v1189, %v1567
    %1569 = vmatpush1.msra.mxu0 %v1568
    %1570 = vmatprep.subr.mxu0 0.0
    %v1571 = vand.u32 %v1190, 4294901760
    %v1572 = vsub.f32 %v1190, %v1571
    %1573 = vmatpush1.msra.mxu0 %v1572
    %1574 = vmatprep.subr.mxu0 0.0
    %v1575 = vand.u32 %v1191, 4294901760
    %v1576 = vsub.f32 %v1191, %v1575
    %1577 = vmatpush1.msra.mxu0 %v1576
    %1578 = vmatprep.subr.mxu0 0.0
    %v1579 = vand.u32 %v1192, 4294901760
    %v1580 = vsub.f32 %v1192, %v1579
    %1581 = vmatpush1.msra.mxu0 %v1580
    %1582 = vmatprep.subr.mxu0 0.0
    %v1583 = vand.u32 %v1193, 4294901760
    %v1584 = vsub.f32 %v1193, %v1583
    %1585 = vmatpush1.msra.mxu0 %v1584
    %1586 = vmatprep.subr.mxu0 0.0
    %v1587 = vand.u32 %v1194, 4294901760
    %v1588 = vsub.f32 %v1194, %v1587
    %1589 = vmatpush1.msra.mxu0 %v1588
    %1590 = vmatprep.subr.mxu0 0.0
    %v1591 = vand.u32 %v1195, 4294901760
    %v1592 = vsub.f32 %v1195, %v1591
    %1593 = vmatpush1.msra.mxu0 %v1592
    %1594 = vmatprep.subr.mxu0 0.0
    %v1595 = vand.u32 %v1196, 4294901760
    %v1596 = vsub.f32 %v1196, %v1595
    %1597 = vmatpush1.msra.mxu0 %v1596
    %1598 = vmatprep.subr.mxu0 0.0
    %v1599 = vand.u32 %v1197, 4294901760
    %v1600 = vsub.f32 %v1197, %v1599
    %1601 = vmatpush1.msra.mxu0 %v1600
    %1602 = vmatprep.subr.mxu0 0.0
    %v1603 = vand.u32 %v1198, 4294901760
    %v1604 = vsub.f32 %v1198, %v1603
    %1605 = vmatpush1.msra.mxu0 %v1604
    %1606 = vmatprep.subr.mxu0 0.0
    %v1607 = vand.u32 %v1199, 4294901760
    %v1608 = vsub.f32 %v1199, %v1607
    %1609 = vmatpush1.msra.mxu0 %v1608
    %1610 = vmatprep.subr.mxu0 0.0
    %v1611 = vand.u32 %v1200, 4294901760
    %v1612 = vsub.f32 %v1200, %v1611
    %1613 = vmatpush1.msra.mxu0 %v1612
    %1614 = vmatprep.subr.mxu0 0.0
    %v1615 = vand.u32 %v1201, 4294901760
    %v1616 = vsub.f32 %v1201, %v1615
    %1617 = vmatpush1.msra.mxu0 %v1616
    %1618 = vmatprep.subr.mxu0 0.0
    %v1619 = vand.u32 %v1202, 4294901760
    %v1620 = vsub.f32 %v1202, %v1619
    %1621 = vmatpush1.msra.mxu0 %v1620
    %1622 = vmatprep.subr.mxu0 0.0
    %v1623 = vand.u32 %v1203, 4294901760
    %v1624 = vsub.f32 %v1203, %v1623
    %1625 = vmatpush1.msra.mxu0 %v1624
    %1626 = vmatprep.subr.mxu0 0.0
    %v1627 = vand.u32 %v1204, 4294901760
    %v1628 = vsub.f32 %v1204, %v1627
    %1629 = vmatpush1.msra.mxu0 %v1628
    %1630 = vmatprep.subr.mxu0 0.0
    %1631 = vmatpush1.msra.mxu0 0.0
    %1632 = vmatprep.subr.mxu0 0.0
    %1633 = vmatpush1.msra.mxu0 0.0
    %1634 = vmatprep.subr.mxu0 0.0
    %1635 = vmatpush1.msra.mxu0 0.0
    %1636 = vmatprep.subr.mxu0 0.0
    %1637 = vmatpush1.msra.mxu0 0.0
    %1638 = vmatprep.subr.mxu0 0.0
    %1639 = vmatpush1.msra.mxu0 0.0
    %1640 = vmatprep.subr.mxu0 0.0
    %1641 = vmatpush1.msra.mxu0 0.0
    %1642 = vmatprep.subr.mxu0 0.0
    %1643 = vmatpush1.msra.mxu0 0.0
    %1644 = vmatprep.subr.mxu0 0.0
    %1645 = vmatpush1.msra.mxu0 0.0
    %1646 = vmatprep.subr.mxu0 0.0
    %1647 = vmatpush1.msra.mxu0 0.0
    %1648 = vmatprep.subr.mxu0 0.0
    %1649 = vmatpush1.msra.mxu0 0.0
    %1650 = vmatprep.subr.mxu0 0.0
    %1651 = vmatpush1.msra.mxu0 0.0
    %1652 = vmatprep.subr.mxu0 0.0
    %1653 = vmatpush1.msra.mxu0 0.0
    %1654 = vmatprep.subr.mxu0 0.0
    %1655 = vmatpush1.msra.mxu0 0.0
    %1656 = vmatprep.subr.mxu0 0.0
    %1657 = vmatpush1.msra.mxu0 0.0
    %1658 = vmatprep.subr.mxu0 0.0
    %1659 = vmatpush1.msra.mxu0 0.0
    %1660 = vmatprep.subr.mxu0 0.0
    %1661 = vmatpush1.msra.mxu0 0.0
    %1662 = vmatprep.mubr.f32.mxu0 0.0
    %v1663 = vand.u32 %v1181, 4294901760
    %v1664 = vsub.f32 %v1181, %v1663
    %1665 = vmatmul.mubr.f32.gmra.mrb[0].mxu0 %v1664
    %v1666 = vpop.f32.mrb[0].mxu0
    %v1667 = vadd.f32 %v1521, %v1666
    %v1668 = vpop.f32.mrb[0].mxu0
    %1669 = vmatprep.mubr.f32.mxu0 0.0
    %v1670 = vand.u32 %v1182, 4294901760
    %v1671 = vsub.f32 %v1182, %v1670
    %1672 = vmatmul.mubr.f32.gmra.mrb[0].mxu0 %v1671
    %v1673 = vpop.f32.mrb[0].mxu0
    %v1674 = vadd.f32 %v1527, %v1673
    %v1675 = vpop.f32.mrb[0].mxu0
    %1676 = vmatprep.mubr.f32.mxu0 0.0
    %v1677 = vand.u32 %v1183, 4294901760
    %v1678 = vsub.f32 %v1183, %v1677
    %1679 = vmatmul.mubr.f32.gmra.mrb[0].mxu0 %v1678
    %v1680 = vpop.f32.mrb[0].mxu0
    %v1681 = vadd.f32 %v1533, %v1680
    %v1682 = vpop.f32.mrb[0].mxu0
    %1683 = vmatprep.mubr.f32.mxu0 0.0
    %v1684 = vand.u32 %v1184, 4294901760
    %v1685 = vsub.f32 %v1184, %v1684
    %1686 = vmatmul.mubr.f32.gmra.mrb[0].mxu0 %v1685
    %v1687 = vpop.f32.mrb[0].mxu0
    %v1688 = vadd.f32 %v1539, %v1687
    %v1689 = vpop.f32.mrb[0].mxu0
    %1690 = vmatprep.mubr.f32.mxu0 0.0
    %v1691 = vand.u32 %v1185, 4294901760
    %v1692 = vsub.f32 %v1185, %v1691
    %1693 = vmatmul.mubr.f32.gmra.mrb[0].mxu0 %v1692
    %v1694 = vpop.f32.mrb[0].mxu0
    %v1695 = vadd.f32 %v1545, %v1694
    %v1696 = vpop.f32.mrb[0].mxu0
    %1697 = vmatprep.mubr.f32.mxu0 0.0
    %v1698 = vand.u32 %v1186, 4294901760
    %v1699 = vsub.f32 %v1186, %v1698
    %1700 = vmatmul.mubr.f32.gmra.mrb[0].mxu0 %v1699
    %v1701 = vpop.f32.mrb[0].mxu0
    %v1702 = vadd.f32 %v1551, %v1701
    %v1703 = vpop.f32.mrb[0].mxu0
    %1704 = vmatprep.mubr.f32.mxu0 0.0
    %v1705 = vand.u32 %v1187, 4294901760
    %v1706 = vsub.f32 %v1187, %v1705
    %1707 = vmatmul.mubr.f32.gmra.mrb[0].mxu0 %v1706
    %v1708 = vpop.f32.mrb[0].mxu0
    %v1709 = vadd.f32 %v1557, %v1708
    %v1710 = vpop.f32.mrb[0].mxu0
    %1711 = vmatprep.mubr.f32.mxu0 0.0
    %v1712 = vand.u32 %v1188, 4294901760
    %v1713 = vsub.f32 %v1188, %v1712
    %1714 = vmatmul.mubr.f32.gmra.mrb[0].mxu0 %v1713
    %v1715 = vpop.f32.mrb[0].mxu0
    %v1716 = vadd.f32 %v1563, %v1715
    %v1717 = vpop.f32.mrb[0].mxu0
    %1718 = vdwg.mxu0
    %1719 = vmatprep.subr.mxu0 0.0
    %v1720 = vand.u32 %v1189, 4294901760
    %1721 = vmatpush1.msra.mxu0 %v1720
    %1722 = vmatprep.subr.mxu0 0.0
    %v1723 = vand.u32 %v1190, 4294901760
    %1724 = vmatpush1.msra.mxu0 %v1723
    %1725 = vmatprep.subr.mxu0 0.0
    %v1726 = vand.u32 %v1191, 4294901760
    %1727 = vmatpush1.msra.mxu0 %v1726
    %1728 = vmatprep.subr.mxu0 0.0
    %v1729 = vand.u32 %v1192, 4294901760
    %1730 = vmatpush1.msra.mxu0 %v1729
    %1731 = vmatprep.subr.mxu0 0.0
    %v1732 = vand.u32 %v1193, 4294901760
    %1733 = vmatpush1.msra.mxu0 %v1732
    %1734 = vmatprep.subr.mxu0 0.0
    %v1735 = vand.u32 %v1194, 4294901760
    %1736 = vmatpush1.msra.mxu0 %v1735
    %1737 = vmatprep.subr.mxu0 0.0
    %v1738 = vand.u32 %v1195, 4294901760
    %1739 = vmatpush1.msra.mxu0 %v1738
    %1740 = vmatprep.subr.mxu0 0.0
    %v1741 = vand.u32 %v1196, 4294901760
    %1742 = vmatpush1.msra.mxu0 %v1741
    %1743 = vmatprep.subr.mxu0 0.0
    %v1744 = vand.u32 %v1197, 4294901760
    %1745 = vmatpush1.msra.mxu0 %v1744
    %1746 = vmatprep.subr.mxu0 0.0
    %v1747 = vand.u32 %v1198, 4294901760
    %1748 = vmatpush1.msra.mxu0 %v1747
    %1749 = vmatprep.subr.mxu0 0.0
    %v1750 = vand.u32 %v1199, 4294901760
    %1751 = vmatpush1.msra.mxu0 %v1750
    %1752 = vmatprep.subr.mxu0 0.0
    %v1753 = vand.u32 %v1200, 4294901760
    %1754 = vmatpush1.msra.mxu0 %v1753
    %1755 = vmatprep.subr.mxu0 0.0
    %v1756 = vand.u32 %v1201, 4294901760
    %1757 = vmatpush1.msra.mxu0 %v1756
    %1758 = vmatprep.subr.mxu0 0.0
    %v1759 = vand.u32 %v1202, 4294901760
    %1760 = vmatpush1.msra.mxu0 %v1759
    %1761 = vmatprep.subr.mxu0 0.0
    %v1762 = vand.u32 %v1203, 4294901760
    %1763 = vmatpush1.msra.mxu0 %v1762
    %1764 = vmatprep.subr.mxu0 0.0
    %v1765 = vand.u32 %v1204, 4294901760
    %1766 = vmatpush1.msra.mxu0 %v1765
    %1767 = vmatprep.subr.mxu0 0.0
    %1768 = vmatpush1.msra.mxu0 0.0
    %1769 = vmatprep.subr.mxu0 0.0
    %1770 = vmatpush1.msra.mxu0 0.0
    %1771 = vmatprep.subr.mxu0 0.0
    %1772 = vmatpush1.msra.mxu0 0.0
    %1773 = vmatprep.subr.mxu0 0.0
    %1774 = vmatpush1.msra.mxu0 0.0
    %1775 = vmatprep.subr.mxu0 0.0
    %1776 = vmatpush1.msra.mxu0 0.0
    %1777 = vmatprep.subr.mxu0 0.0
    %1778 = vmatpush1.msra.mxu0 0.0
    %1779 = vmatprep.subr.mxu0 0.0
    %1780 = vmatpush1.msra.mxu0 0.0
    %1781 = vmatprep.subr.mxu0 0.0
    %1782 = vmatpush1.msra.mxu0 0.0
    %1783 = vmatprep.subr.mxu0 0.0
    %1784 = vmatpush1.msra.mxu0 0.0
    %1785 = vmatprep.subr.mxu0 0.0
    %1786 = vmatpush1.msra.mxu0 0.0
    %1787 = vmatprep.subr.mxu0 0.0
    %1788 = vmatpush1.msra.mxu0 0.0
    %1789 = vmatprep.subr.mxu0 0.0
    %1790 = vmatpush1.msra.mxu0 0.0
    %1791 = vmatprep.subr.mxu0 0.0
    %1792 = vmatpush1.msra.mxu0 0.0
    %1793 = vmatprep.subr.mxu0 0.0
    %1794 = vmatpush1.msra.mxu0 0.0
    %1795 = vmatprep.subr.mxu0 0.0
    %1796 = vmatpush1.msra.mxu0 0.0
    %1797 = vmatprep.subr.mxu0 0.0
    %1798 = vmatpush1.msra.mxu0 0.0
    %1799 = vmatprep.mubr.f32.mxu0 0.0
    %v1800 = vand.u32 %v1181, 4294901760
    %v1801 = vsub.f32 %v1181, %v1800
    %v1802 = vand.u32 %v1801, 4294901760
    %1803 = vmatmul.mubr.f32.gmra.mrb[0].mxu0 %v1802
    %v1804 = vpop.f32.mrb[0].mxu0
    %v1805 = vadd.f32 %v1667, %v1804
    %v1806 = vpop.f32.mrb[0].mxu0
    %1807 = vmatprep.mubr.f32.mxu0 0.0
    %v1808 = vand.u32 %v1182, 4294901760
    %v1809 = vsub.f32 %v1182, %v1808
    %v1810 = vand.u32 %v1809, 4294901760
    %1811 = vmatmul.mubr.f32.gmra.mrb[0].mxu0 %v1810
    %v1812 = vpop.f32.mrb[0].mxu0
    %v1813 = vadd.f32 %v1674, %v1812
    %v1814 = vpop.f32.mrb[0].mxu0
    %1815 = vmatprep.mubr.f32.mxu0 0.0
    %v1816 = vand.u32 %v1183, 4294901760
    %v1817 = vsub.f32 %v1183, %v1816
    %v1818 = vand.u32 %v1817, 4294901760
    %1819 = vmatmul.mubr.f32.gmra.mrb[0].mxu0 %v1818
    %v1820 = vpop.f32.mrb[0].mxu0
    %v1821 = vadd.f32 %v1681, %v1820
    %v1822 = vpop.f32.mrb[0].mxu0
    %1823 = vmatprep.mubr.f32.mxu0 0.0
    %v1824 = vand.u32 %v1184, 4294901760
    %v1825 = vsub.f32 %v1184, %v1824
    %v1826 = vand.u32 %v1825, 4294901760
    %1827 = vmatmul.mubr.f32.gmra.mrb[0].mxu0 %v1826
    %v1828 = vpop.f32.mrb[0].mxu0
    %v1829 = vadd.f32 %v1688, %v1828
    %v1830 = vpop.f32.mrb[0].mxu0
    %1831 = vmatprep.mubr.f32.mxu0 0.0
    %v1832 = vand.u32 %v1185, 4294901760
    %v1833 = vsub.f32 %v1185, %v1832
    %v1834 = vand.u32 %v1833, 4294901760
    %1835 = vmatmul.mubr.f32.gmra.mrb[0].mxu0 %v1834
    %v1836 = vpop.f32.mrb[0].mxu0
    %v1837 = vadd.f32 %v1695, %v1836
    %v1838 = vpop.f32.mrb[0].mxu0
    %1839 = vmatprep.mubr.f32.mxu0 0.0
    %v1840 = vand.u32 %v1186, 4294901760
    %v1841 = vsub.f32 %v1186, %v1840
    %v1842 = vand.u32 %v1841, 4294901760
    %1843 = vmatmul.mubr.f32.gmra.mrb[0].mxu0 %v1842
    %v1844 = vpop.f32.mrb[0].mxu0
    %v1845 = vadd.f32 %v1702, %v1844
    %v1846 = vpop.f32.mrb[0].mxu0
    %1847 = vmatprep.mubr.f32.mxu0 0.0
    %v1848 = vand.u32 %v1187, 4294901760
    %v1849 = vsub.f32 %v1187, %v1848
    %v1850 = vand.u32 %v1849, 4294901760
    %1851 = vmatmul.mubr.f32.gmra.mrb[0].mxu0 %v1850
    %v1852 = vpop.f32.mrb[0].mxu0
    %v1853 = vadd.f32 %v1709, %v1852
    %v1854 = vpop.f32.mrb[0].mxu0
    %1855 = vmatprep.mubr.f32.mxu0 0.0
    %v1856 = vand.u32 %v1188, 4294901760
    %v1857 = vsub.f32 %v1188, %v1856
    %v1858 = vand.u32 %v1857, 4294901760
    %1859 = vmatmul.mubr.f32.gmra.mrb[0].mxu0 %v1858
    %v1860 = vpop.f32.mrb[0].mxu0
    %v1861 = vadd.f32 %v1716, %v1860
    %v1862 = vpop.f32.mrb[0].mxu0
    %1863 = vdwg.mxu0
    %1864 = vmatprep.subr.mxu0 0.0
    %v1865 = vand.u32 %v1189, 4294901760
    %v1866 = vsub.f32 %v1189, %v1865
    %v1867 = vand.u32 %v1866, 4294901760
    %1868 = vmatpush1.msra.mxu0 %v1867
    %1869 = vmatprep.subr.mxu0 0.0
    %v1870 = vand.u32 %v1190, 4294901760
    %v1871 = vsub.f32 %v1190, %v1870
    %v1872 = vand.u32 %v1871, 4294901760
    %1873 = vmatpush1.msra.mxu0 %v1872
    %1874 = vmatprep.subr.mxu0 0.0
    %v1875 = vand.u32 %v1191, 4294901760
    %v1876 = vsub.f32 %v1191, %v1875
    %v1877 = vand.u32 %v1876, 4294901760
    %1878 = vmatpush1.msra.mxu0 %v1877
    %1879 = vmatprep.subr.mxu0 0.0
    %v1880 = vand.u32 %v1192, 4294901760
    %v1881 = vsub.f32 %v1192, %v1880
    %v1882 = vand.u32 %v1881, 4294901760
    %1883 = vmatpush1.msra.mxu0 %v1882
    %1884 = vmatprep.subr.mxu0 0.0
    %v1885 = vand.u32 %v1193, 4294901760
    %v1886 = vsub.f32 %v1193, %v1885
    %v1887 = vand.u32 %v1886, 4294901760
    %1888 = vmatpush1.msra.mxu0 %v1887
    %1889 = vmatprep.subr.mxu0 0.0
    %v1890 = vand.u32 %v1194, 4294901760
    %v1891 = vsub.f32 %v1194, %v1890
    %v1892 = vand.u32 %v1891, 4294901760
    %1893 = vmatpush1.msra.mxu0 %v1892
    %1894 = vmatprep.subr.mxu0 0.0
    %v1895 = vand.u32 %v1195, 4294901760
    %v1896 = vsub.f32 %v1195, %v1895
    %v1897 = vand.u32 %v1896, 4294901760
    %1898 = vmatpush1.msra.mxu0 %v1897
    %1899 = vmatprep.subr.mxu0 0.0
    %v1900 = vand.u32 %v1196, 4294901760
    %v1901 = vsub.f32 %v1196, %v1900
    %v1902 = vand.u32 %v1901, 4294901760
    %1903 = vmatpush1.msra.mxu0 %v1902
    %1904 = vmatprep.subr.mxu0 0.0
    %v1905 = vand.u32 %v1197, 4294901760
    %v1906 = vsub.f32 %v1197, %v1905
    %v1907 = vand.u32 %v1906, 4294901760
    %1908 = vmatpush1.msra.mxu0 %v1907
    %1909 = vmatprep.subr.mxu0 0.0
    %v1910 = vand.u32 %v1198, 4294901760
    %v1911 = vsub.f32 %v1198, %v1910
    %v1912 = vand.u32 %v1911, 4294901760
    %1913 = vmatpush1.msra.mxu0 %v1912
    %1914 = vmatprep.subr.mxu0 0.0
    %v1915 = vand.u32 %v1199, 4294901760
    %v1916 = vsub.f32 %v1199, %v1915
    %v1917 = vand.u32 %v1916, 4294901760
    %1918 = vmatpush1.msra.mxu0 %v1917
    %1919 = vmatprep.subr.mxu0 0.0
    %v1920 = vand.u32 %v1200, 4294901760
    %v1921 = vsub.f32 %v1200, %v1920
    %v1922 = vand.u32 %v1921, 4294901760
    %1923 = vmatpush1.msra.mxu0 %v1922
    %1924 = vmatprep.subr.mxu0 0.0
    %v1925 = vand.u32 %v1201, 4294901760
    %v1926 = vsub.f32 %v1201, %v1925
    %v1927 = vand.u32 %v1926, 4294901760
    %1928 = vmatpush1.msra.mxu0 %v1927
    %1929 = vmatprep.subr.mxu0 0.0
    %v1930 = vand.u32 %v1202, 4294901760
    %v1931 = vsub.f32 %v1202, %v1930
    %v1932 = vand.u32 %v1931, 4294901760
    %1933 = vmatpush1.msra.mxu0 %v1932
    %1934 = vmatprep.subr.mxu0 0.0
    %v1935 = vand.u32 %v1203, 4294901760
    %v1936 = vsub.f32 %v1203, %v1935
    %v1937 = vand.u32 %v1936, 4294901760
    %1938 = vmatpush1.msra.mxu0 %v1937
    %1939 = vmatprep.subr.mxu0 0.0
    %v1940 = vand.u32 %v1204, 4294901760
    %v1941 = vsub.f32 %v1204, %v1940
    %v1942 = vand.u32 %v1941, 4294901760
    %1943 = vmatpush1.msra.mxu0 %v1942
    %1944 = vmatprep.subr.mxu0 0.0
    %1945 = vmatpush1.msra.mxu0 0.0
    %1946 = vmatprep.subr.mxu0 0.0
    %1947 = vmatpush1.msra.mxu0 0.0
    %1948 = vmatprep.subr.mxu0 0.0
    %1949 = vmatpush1.msra.mxu0 0.0
    %1950 = vmatprep.subr.mxu0 0.0
    %1951 = vmatpush1.msra.mxu0 0.0
    %1952 = vmatprep.subr.mxu0 0.0
    %1953 = vmatpush1.msra.mxu0 0.0
    %1954 = vmatprep.subr.mxu0 0.0
    %1955 = vmatpush1.msra.mxu0 0.0
    %1956 = vmatprep.subr.mxu0 0.0
    %1957 = vmatpush1.msra.mxu0 0.0
    %1958 = vmatprep.subr.mxu0 0.0
    %1959 = vmatpush1.msra.mxu0 0.0
    %1960 = vmatprep.subr.mxu0 0.0
    %1961 = vmatpush1.msra.mxu0 0.0
    %1962 = vmatprep.subr.mxu0 0.0
    %1963 = vmatpush1.msra.mxu0 0.0
    %1964 = vmatprep.subr.mxu0 0.0
    %1965 = vmatpush1.msra.mxu0 0.0
    %1966 = vmatprep.subr.mxu0 0.0
    %1967 = vmatpush1.msra.mxu0 0.0
    %1968 = vmatprep.subr.mxu0 0.0
    %1969 = vmatpush1.msra.mxu0 0.0
    %1970 = vmatprep.subr.mxu0 0.0
    %1971 = vmatpush1.msra.mxu0 0.0
    %1972 = vmatprep.subr.mxu0 0.0
    %1973 = vmatpush1.msra.mxu0 0.0
    %1974 = vmatprep.subr.mxu0 0.0
    %1975 = vmatpush1.msra.mxu0 0.0
    %1976 = vmatprep.mubr.f32.mxu0 0.0
    %v1977 = vand.u32 %v1181, 4294901760
    %1978 = vmatmul.mubr.f32.gmra.mrb[0].mxu0 %v1977
    %v1979 = vpop.f32.mrb[0].mxu0
    %v1980 = vadd.f32 %v1805, %v1979
    %v1981 = vpop.f32.mrb[0].mxu0
    %1982 = vmatprep.mubr.f32.mxu0 0.0
    %v1983 = vand.u32 %v1182, 4294901760
    %1984 = vmatmul.mubr.f32.gmra.mrb[0].mxu0 %v1983
    %v1985 = vpop.f32.mrb[0].mxu0
    %v1986 = vadd.f32 %v1813, %v1985
    %v1987 = vpop.f32.mrb[0].mxu0
    %1988 = vmatprep.mubr.f32.mxu0 0.0
    %v1989 = vand.u32 %v1183, 4294901760
    %1990 = vmatmul.mubr.f32.gmra.mrb[0].mxu0 %v1989
    %v1991 = vpop.f32.mrb[0].mxu0
    %v1992 = vadd.f32 %v1821, %v1991
    %v1993 = vpop.f32.mrb[0].mxu0
    %1994 = vmatprep.mubr.f32.mxu0 0.0
    %v1995 = vand.u32 %v1184, 4294901760
    %1996 = vmatmul.mubr.f32.gmra.mrb[0].mxu0 %v1995
    %v1997 = vpop.f32.mrb[0].mxu0
    %v1998 = vadd.f32 %v1829, %v1997
    %v1999 = vpop.f32.mrb[0].mxu0
    %2000 = vmatprep.mubr.f32.mxu0 0.0
    %v2001 = vand.u32 %v1185, 4294901760
    %2002 = vmatmul.mubr.f32.gmra.mrb[0].mxu0 %v2001
    %v2003 = vpop.f32.mrb[0].mxu0
    %v2004 = vadd.f32 %v1837, %v2003
    %v2005 = vpop.f32.mrb[0].mxu0
    %2006 = vmatprep.mubr.f32.mxu0 0.0
    %v2007 = vand.u32 %v1186, 4294901760
    %2008 = vmatmul.mubr.f32.gmra.mrb[0].mxu0 %v2007
    %v2009 = vpop.f32.mrb[0].mxu0
    %v2010 = vadd.f32 %v1845, %v2009
    %v2011 = vpop.f32.mrb[0].mxu0
    %2012 = vmatprep.mubr.f32.mxu0 0.0
    %v2013 = vand.u32 %v1187, 4294901760
    %2014 = vmatmul.mubr.f32.gmra.mrb[0].mxu0 %v2013
    %v2015 = vpop.f32.mrb[0].mxu0
    %v2016 = vadd.f32 %v1853, %v2015
    %v2017 = vpop.f32.mrb[0].mxu0
    %2018 = vmatprep.mubr.f32.mxu0 0.0
    %v2019 = vand.u32 %v1188, 4294901760
    %2020 = vmatmul.mubr.f32.gmra.mrb[0].mxu0 %v2019
    %v2021 = vpop.f32.mrb[0].mxu0
    %v2022 = vadd.f32 %v1861, %v2021
    %v2023 = vpop.f32.mrb[0].mxu0
    %2024 = vdwg.mxu0
    %2025 = vmatprep.subr.mxu0 0.0
    %v2026 = vand.u32 %v1189, 4294901760
    %2027 = vmatpush1.msra.mxu0 %v2026
    %2028 = vmatprep.subr.mxu0 0.0
    %v2029 = vand.u32 %v1190, 4294901760
    %2030 = vmatpush1.msra.mxu0 %v2029
    %2031 = vmatprep.subr.mxu0 0.0
    %v2032 = vand.u32 %v1191, 4294901760
    %2033 = vmatpush1.msra.mxu0 %v2032
    %2034 = vmatprep.subr.mxu0 0.0
    %v2035 = vand.u32 %v1192, 4294901760
    %2036 = vmatpush1.msra.mxu0 %v2035
    %2037 = vmatprep.subr.mxu0 0.0
    %v2038 = vand.u32 %v1193, 4294901760
    %2039 = vmatpush1.msra.mxu0 %v2038
    %2040 = vmatprep.subr.mxu0 0.0
    %v2041 = vand.u32 %v1194, 4294901760
    %2042 = vmatpush1.msra.mxu0 %v2041
    %2043 = vmatprep.subr.mxu0 0.0
    %v2044 = vand.u32 %v1195, 4294901760
    %2045 = vmatpush1.msra.mxu0 %v2044
    %2046 = vmatprep.subr.mxu0 0.0
    %v2047 = vand.u32 %v1196, 4294901760
    %2048 = vmatpush1.msra.mxu0 %v2047
    %2049 = vmatprep.subr.mxu0 0.0
    %v2050 = vand.u32 %v1197, 4294901760
    %2051 = vmatpush1.msra.mxu0 %v2050
    %2052 = vmatprep.subr.mxu0 0.0
    %v2053 = vand.u32 %v1198, 4294901760
    %2054 = vmatpush1.msra.mxu0 %v2053
    %2055 = vmatprep.subr.mxu0 0.0
    %v2056 = vand.u32 %v1199, 4294901760
    %2057 = vmatpush1.msra.mxu0 %v2056
    %2058 = vmatprep.subr.mxu0 0.0
    %v2059 = vand.u32 %v1200, 4294901760
    %2060 = vmatpush1.msra.mxu0 %v2059
    %2061 = vmatprep.subr.mxu0 0.0
    %v2062 = vand.u32 %v1201, 4294901760
    %2063 = vmatpush1.msra.mxu0 %v2062
    %2064 = vmatprep.subr.mxu0 0.0
    %v2065 = vand.u32 %v1202, 4294901760
    %2066 = vmatpush1.msra.mxu0 %v2065
    %2067 = vmatprep.subr.mxu0 0.0
    %v2068 = vand.u32 %v1203, 4294901760
    %2069 = vmatpush1.msra.mxu0 %v2068
    %2070 = vmatprep.subr.mxu0 0.0
    %v2071 = vand.u32 %v1204, 4294901760
    %2072 = vmatpush1.msra.mxu0 %v2071
    %2073 = vmatprep.subr.mxu0 0.0
    %2074 = vmatpush1.msra.mxu0 0.0
    %2075 = vmatprep.subr.mxu0 0.0
    %2076 = vmatpush1.msra.mxu0 0.0
    %2077 = vmatprep.subr.mxu0 0.0
    %2078 = vmatpush1.msra.mxu0 0.0
    %2079 = vmatprep.subr.mxu0 0.0
    %2080 = vmatpush1.msra.mxu0 0.0
    %2081 = vmatprep.subr.mxu0 0.0
    %2082 = vmatpush1.msra.mxu0 0.0
    %2083 = vmatprep.subr.mxu0 0.0
    %2084 = vmatpush1.msra.mxu0 0.0
    %2085 = vmatprep.subr.mxu0 0.0
    %2086 = vmatpush1.msra.mxu0 0.0
    %2087 = vmatprep.subr.mxu0 0.0
    %2088 = vmatpush1.msra.mxu0 0.0
    %2089 = vmatprep.subr.mxu0 0.0
    %2090 = vmatpush1.msra.mxu0 0.0
    %2091 = vmatprep.subr.mxu0 0.0
    %2092 = vmatpush1.msra.mxu0 0.0
    %2093 = vmatprep.subr.mxu0 0.0
    %2094 = vmatpush1.msra.mxu0 0.0
    %2095 = vmatprep.subr.mxu0 0.0
    %2096 = vmatpush1.msra.mxu0 0.0
    %2097 = vmatprep.subr.mxu0 0.0
    %2098 = vmatpush1.msra.mxu0 0.0
    %2099 = vmatprep.subr.mxu0 0.0
    %2100 = vmatpush1.msra.mxu0 0.0
    %2101 = vmatprep.subr.mxu0 0.0
    %2102 = vmatpush1.msra.mxu0 0.0
    %2103 = vmatprep.subr.mxu0 0.0
    %2104 = vmatpush1.msra.mxu0 0.0
    %2105 = vmatprep.mubr.f32.mxu0 0.0
    %v2106 = vand.u32 %v1181, 4294901760
    %2107 = vmatmul.mubr.f32.gmra.mrb[0].mxu0 %v2106
    %v2108 = vpop.f32.mrb[0].mxu0
    %v2109 = vadd.f32 %v1980, %v2108
    %v2110 = vpop.f32.mrb[0].mxu0
    %2111 = vmatprep.mubr.f32.mxu0 0.0
    %v2112 = vand.u32 %v1182, 4294901760
    %2113 = vmatmul.mubr.f32.gmra.mrb[0].mxu0 %v2112
    %v2114 = vpop.f32.mrb[0].mxu0
    %v2115 = vadd.f32 %v1986, %v2114
    %v2116 = vpop.f32.mrb[0].mxu0
    %2117 = vmatprep.mubr.f32.mxu0 0.0
    %v2118 = vand.u32 %v1183, 4294901760
    %2119 = vmatmul.mubr.f32.gmra.mrb[0].mxu0 %v2118
    %v2120 = vpop.f32.mrb[0].mxu0
    %v2121 = vadd.f32 %v1992, %v2120
    %v2122 = vpop.f32.mrb[0].mxu0
    %2123 = vmatprep.mubr.f32.mxu0 0.0
    %v2124 = vand.u32 %v1184, 4294901760
    %2125 = vmatmul.mubr.f32.gmra.mrb[0].mxu0 %v2124
    %v2126 = vpop.f32.mrb[0].mxu0
    %v2127 = vadd.f32 %v1998, %v2126
    %v2128 = vpop.f32.mrb[0].mxu0
    %2129 = vmatprep.mubr.f32.mxu0 0.0
    %v2130 = vand.u32 %v1185, 4294901760
    %2131 = vmatmul.mubr.f32.gmra.mrb[0].mxu0 %v2130
    %v2132 = vpop.f32.mrb[0].mxu0
    %v2133 = vadd.f32 %v2004, %v2132
    %v2134 = vpop.f32.mrb[0].mxu0
    %2135 = vmatprep.mubr.f32.mxu0 0.0
    %v2136 = vand.u32 %v1186, 4294901760
    %2137 = vmatmul.mubr.f32.gmra.mrb[0].mxu0 %v2136
    %v2138 = vpop.f32.mrb[0].mxu0
    %v2139 = vadd.f32 %v2010, %v2138
    %v2140 = vpop.f32.mrb[0].mxu0
    %2141 = vmatprep.mubr.f32.mxu0 0.0
    %v2142 = vand.u32 %v1187, 4294901760
    %2143 = vmatmul.mubr.f32.gmra.mrb[0].mxu0 %v2142
    %v2144 = vpop.f32.mrb[0].mxu0
    %v2145 = vadd.f32 %v2016, %v2144
    %v2146 = vpop.f32.mrb[0].mxu0
    %2147 = vmatprep.mubr.f32.mxu0 0.0
    %v2148 = vand.u32 %v1188, 4294901760
    %2149 = vmatmul.mubr.f32.gmra.mrb[0].mxu0 %v2148
    %v2150 = vpop.f32.mrb[0].mxu0
    %v2151 = vadd.f32 %v2022, %v2150
    %v2152 = vpop.f32.mrb[0].mxu0
    %2153 = vdwg.mxu0
    %2154 = vst [vmem:[#allocation8] sm:$0xff] %v2109
    %2155 = vst [vmem:[#allocation8 + $0x8] sm:$0xff] %v2115
    %2156 = vst [vmem:[#allocation8 + $0x10] sm:$0xff] %v2121
    %2157 = vst [vmem:[#allocation8 + $0x18] sm:$0xff] %v2127
    %2158 = vst [vmem:[#allocation8 + $0x20] sm:$0xff] %v2133
    %2159 = vst [vmem:[#allocation8 + $0x28] sm:$0xff] %v2139
    %2160 = vst [vmem:[#allocation8 + $0x30] sm:$0xff] %v2145
    %2161 = vst [vmem:[#allocation8 + $0x38] sm:$0xff] %v2151
    // Predicated region
    $region42: #{mlp_forward_padded.1} parent=1 // pred_check
      _
    $region43: #{mlp_forward_padded.1} parent=1 // pred_check_branch
      %2163 = sbr.rel (0) target = $region45
    $region44: #{mlp_forward_padded.1} parent=1 // pred_region
      %s2165 = ssub.s32 1024, 1024
      %2166 = vsyncadd [#allocation4], %s2165
      %s2167 = sshll.u32 [#allocation8], 4
      %s2168 = int_to_ptr.vmem [resolvable:$true] %s2167
      %2173 = dma.vmem_to_hbm [thread:$0]  %s2168, 1024, %s7, [#allocation4], 128, 128, 8
    $region45: #{mlp_forward_padded.1} parent=1 // pred_fallthru
      _
    // Predicated region
    $region46: #{mlp_forward_padded.1} parent=1 // pred_check
      _
    $region47: #{mlp_forward_padded.1} parent=1 // pred_check_branch
      %2175 = sbr.rel (0) target = $region49
    $region48: #{mlp_forward_padded.1} parent=1 // pred_region
      %2176 = dma.done [#allocation4], 1024
    $region49: #{mlp_forward_padded.1} parent=1 // pred_fallthru
      _
    %2177 = vsyncpa [#allocation3], 1
    %2178 = vsyncpa [#allocation6], 1
    %2179 = vsyncpa [#allocation4], 1

</llo_original>
